<compile_context>
chip_gen: v6e
topology: v6e:2x2x1
jax: 0.10.0
libtpu: 0.0.40
codegen_flags: <defaults>
</compile_context>

<pallas_src>
import functools

import numpy as np

import jax
import jax.numpy as jnp
from jax.experimental import pallas as pl
from jax.experimental.pallas import tpu as pltpu


NEG_INF = -1e9
LOSS_LANES = 128


def _pick(n, cap):
    """Largest tile <= cap that divides n (prefer multiples of 128, then 8)."""
    if n <= cap:
        return n
    for align in (128, 8, 1):
        t = (cap // align) * align
        while t >= align:
            if n % t == 0:
                return t
            t -= align
    return n


def _round_up(n, m):
    return ((n + m - 1) // m) * m


def _cparams(dims, vmem_est_bytes):
    """CompilerParams with an explicit scoped-VMEM limit.

    v5e default scoped VMEM is only 16 MiB; v7x physical VMEM is 64 MiB.
    Estimate is doubled (double-buffering) and clamped to [16 MiB, 64 MiB].
    """
    limit = int(min(max(2 * vmem_est_bytes + (2 << 20), 16 << 20), 64 << 20))
    return pltpu.CompilerParams(dimension_semantics=dims,
                                vmem_limit_bytes=limit)


# ----------------------------- Pallas kernels ------------------------------

def _matmul_kernel(x_ref, w_ref, b_ref, o_ref, *, activation):
    """Weight-resident x @ w + b with optional GELU epilogue; f32 accum."""
    y = jnp.dot(x_ref[...], w_ref[...],
                preferred_element_type=jnp.float32) + b_ref[...]
    if activation == "gelu":
        # tanh-approx GELU (transcendental stays on the EUP slot).
        # TODO(synk): HF BERT default is exact erf-GELU; small drift.
        y = 0.5 * y * (1.0 + jnp.tanh(
            0.7978845608028654 * (y + 0.044715 * y * y * y)))
    o_ref[...] = y.astype(o_ref.dtype)


def matmul(x, w, b, activation=None, out_dtype=jnp.bfloat16, tm_cap=256):
    M, K = x.shape
    N = w.shape[1]
    tm = _pick(M, tm_cap)
    # bf16 blocks (x, w, b, out) + f32 epilogue temp.
    vmem_est = 2 * (tm * K + K * N + N + tm * N) + 4 * tm * N
    return pl.pallas_call(
        functools.partial(_matmul_kernel, activation=activation),
        out_shape=jax.ShapeDtypeStruct((M, N), out_dtype),
        grid=(M // tm,),
        in_specs=[
            pl.BlockSpec((tm, K), lambda i: (i, 0)),
            pl.BlockSpec((K, N), lambda i: (0, 0)),   # weight fetched once
            pl.BlockSpec((1, N), lambda i: (0, 0)),
        ],
        out_specs=pl.BlockSpec((tm, N), lambda i: (i, 0)),
        compiler_params=_cparams(("parallel",), vmem_est),
    )(x, w, b)


def _matmul_res_ln_kernel(x_ref, w_ref, b_ref, r_ref, g_ref, bln_ref,
                          o_ref, *, eps):
    """Fused LayerNorm((x @ w + b) + residual); weight-resident, f32 accum."""
    y = jnp.dot(x_ref[...], w_ref[...], preferred_element_type=jnp.float32)
    y = y + b_ref[...] + r_ref[...].astype(jnp.float32)
    mu = jnp.mean(y, axis=-1, keepdims=True)
    yc = y - mu
    var = jnp.mean(yc * yc, axis=-1, keepdims=True)
    o_ref[...] = (yc * jax.lax.rsqrt(var + eps) * g_ref[...]
                  + bln_ref[...]).astype(o_ref.dtype)


def matmul_residual_ln(x, w, b, residual, gamma, beta,
                       out_dtype=jnp.bfloat16, tm_cap=256):
    M, K = x.shape
    H = w.shape[1]
    tm = _pick(M, tm_cap)
    vmem_est = (2 * (tm * K + K * H + tm * H + tm * H)
                + 4 * 3 * H + 4 * tm * H)
    return pl.pallas_call(
        functools.partial(_matmul_res_ln_kernel, eps=1e-12),
        out_shape=jax.ShapeDtypeStruct((M, H), out_dtype),
        grid=(M // tm,),
        in_specs=[
            pl.BlockSpec((tm, K), lambda i: (i, 0)),
            pl.BlockSpec((K, H), lambda i: (0, 0)),   # weight fetched once
            pl.BlockSpec((1, H), lambda i: (0, 0)),
            pl.BlockSpec((tm, H), lambda i: (i, 0)),
            pl.BlockSpec((1, H), lambda i: (0, 0)),
            pl.BlockSpec((1, H), lambda i: (0, 0)),
        ],
        out_specs=pl.BlockSpec((tm, H), lambda i: (i, 0)),
        compiler_params=_cparams(("parallel",), vmem_est),
    )(x, w, b, residual, gamma, beta)


def _ln_kernel(x_ref, g_ref, b_ref, o_ref, *, eps):
    x = x_ref[...].astype(jnp.float32)
    mu = jnp.mean(x, axis=-1, keepdims=True)
    xc = x - mu
    var = jnp.mean(xc * xc, axis=-1, keepdims=True)
    o_ref[...] = (xc * jax.lax.rsqrt(var + eps) * g_ref[...]
                  + b_ref[...]).astype(o_ref.dtype)


def layernorm(x, g, b, out_dtype=jnp.bfloat16, tm_cap=512):
    M, H = x.shape
    tm = _pick(M, tm_cap)
    vmem_est = 2 * 2 * tm * H + 8 * H + 4 * tm * H
    return pl.pallas_call(
        functools.partial(_ln_kernel, eps=1e-12),
        out_shape=jax.ShapeDtypeStruct((M, H), out_dtype),
        grid=(M // tm,),
        in_specs=[
            pl.BlockSpec((tm, H), lambda i: (i, 0)),
            pl.BlockSpec((1, H), lambda i: (0, 0)),
            pl.BlockSpec((1, H), lambda i: (0, 0)),
        ],
        out_specs=pl.BlockSpec((tm, H), lambda i: (i, 0)),
        compiler_params=_cparams(("parallel",), vmem_est),
    )(x, g, b)


def _attention_kernel(q_ref, k_ref, v_ref, m_ref, o_ref):
    """MHSA for one (batch, head-group) block; heads batched in one einsum."""
    q = q_ref[0]                       # (HG, S, D) bf16 — 1/sqrt(D) pre-folded
    k = k_ref[0]
    v = v_ref[0]
    mask = m_ref[0]                    # (1, S) f32 additive padding mask
    s = jnp.einsum("hqd,hkd->hqk", q, k,
                   preferred_element_type=jnp.float32) + mask
    mx = jnp.max(s, axis=-1, keepdims=True)
    ex = jnp.exp(s - mx)
    p = ex * pl.reciprocal(jnp.sum(ex, axis=-1, keepdims=True), approx=True)
    ctx = jnp.einsum("hqk,hkd->hqd", p.astype(v.dtype), v,
                     preferred_element_type=jnp.float32)
    o_ref[0] = ctx.astype(o_ref.dtype)


def attention(q, k, v, add_mask, out_dtype=jnp.bfloat16):
    # TODO(synk): flash-style KV tiling (running max/sum) is required for
    # production S on v7x's 64 MiB VMEM; fine for small S here.
    B, NH, S, D = q.shape
    G = 2 if (NH % 2 == 0 and NH >= 2) else 1    # head groups -> 2nd parallel axis
    HG = NH // G
    blk = (1, HG, S, D)
    vmem_est = 4 * HG * S * D * 2 + 4 * S + 3 * HG * S * S * 4
    return pl.pallas_call(
        _attention_kernel,
        out_shape=jax.ShapeDtypeStruct((B, NH, S, D), out_dtype),
        grid=(B, G),
        in_specs=[
            pl.BlockSpec(blk, lambda b, g: (b, g, 0, 0)),
            pl.BlockSpec(blk, lambda b, g: (b, g, 0, 0)),
            pl.BlockSpec(blk, lambda b, g: (b, g, 0, 0)),
            pl.BlockSpec((1, 1, S), lambda b, g: (b, 0, 0)),
        ],
        out_specs=pl.BlockSpec(blk, lambda b, g: (b, g, 0, 0)),
        compiler_params=_cparams(("parallel", "parallel"), vmem_est),
    )(q, k, v, add_mask)


def _pool_classify_kernel(h_ref, m_ref, w1_ref, w2_ref, b_ref, lab_ref,
                          logits_ref, probs_ref, loss_ref, *, P):
    """Per-batch entity pooling, classifier, sigmoid probs and CE loss."""
    h = h_ref[0]                                     # (S, H)  bf16
    m = m_ref[0]                                     # (2P, S) bf16 pooling mask
    pooled = jnp.dot(m, h, preferred_element_type=jnp.float32)   # (2P, H)
    e1 = pooled[:P].astype(jnp.bfloat16)
    e2 = pooled[P:].astype(jnp.bfloat16)
    # classifier(concat([e1, e2])) == e1 @ W[:, :H].T + e2 @ W[:, H:].T + b
    logits = (jnp.dot(e1, w1_ref[...], preferred_element_type=jnp.float32)
              + jnp.dot(e2, w2_ref[...], preferred_element_type=jnp.float32)
              + b_ref[...])                          # (P, CP); padded cols ~ -1e9
    logits_ref[0] = logits
    # exact sigmoid; clamp so padded (-1e9) lanes cannot overflow to inf/NaN
    probs_ref[0] = 1.0 / (1.0 + jnp.exp(-jnp.clip(logits, -30.0, 30.0)))
    # CrossEntropyLoss with probability targets: -sum(target * log_softmax)
    mx = jnp.max(logits, axis=-1, keepdims=True)
    lse = mx + jnp.log(jnp.sum(jnp.exp(logits - mx), axis=-1, keepdims=True))
    loss_b = -jnp.sum(lab_ref[0] * (logits - lse))   # sum over pairs & labels
    loss_ref[0] = jnp.broadcast_to(loss_b, (1, LOSS_LANES)).astype(jnp.float32)


def pool_and_classify(hidden, m_pool, wc1, wc2, bc, labels_padded):
    B, S, H = hidden.shape
    P2 = m_pool.shape[1]
    P = P2 // 2
    CP = wc1.shape[1]
    vmem_est = (2 * S * H + 2 * P2 * S + 2 * 2 * H * CP + 4 * CP
                + 4 * P2 * H + 4 * 4 * P * CP + 4 * LOSS_LANES)
    out_shapes = (
        jax.ShapeDtypeStruct((B, P, CP), jnp.float32),        # logits (padded)
        jax.ShapeDtypeStruct((B, P, CP), jnp.float32),        # sigmoid probs
        jax.ShapeDtypeStruct((B, 1, LOSS_LANES), jnp.float32),  # per-batch loss
    )
    return pl.pallas_call(
        functools.partial(_pool_classify_kernel, P=P),
        out_shape=out_shapes,
        grid=(B,),
        in_specs=[
            pl.BlockSpec((1, S, H), lambda b: (b, 0, 0)),
            pl.BlockSpec((1, P2, S), lambda b: (b, 0, 0)),
            pl.BlockSpec((H, CP), lambda b: (0, 0)),
            pl.BlockSpec((H, CP), lambda b: (0, 0)),
            pl.BlockSpec((1, CP), lambda b: (0, 0)),
            pl.BlockSpec((1, P, CP), lambda b: (b, 0, 0)),
        ],
        out_specs=(
            pl.BlockSpec((1, P, CP), lambda b: (b, 0, 0)),
            pl.BlockSpec((1, P, CP), lambda b: (b, 0, 0)),
            pl.BlockSpec((1, 1, LOSS_LANES), lambda b: (b, 0, 0)),
        ),
        compiler_params=_cparams(("parallel",), vmem_est),
    )(hidden, m_pool, wc1, wc2, bc, labels_padded)


# ------------------------------ model glue ---------------------------------

def init_params(key, *, vocab, max_pos, type_vocab, H, L, I, C, num_heads):
    CP = _round_up(C, 128)
    D = H // num_heads
    scale = 1.0 / float(D) ** 0.5
    keys = iter(jax.random.split(key, 8 + 8 * L))

    def rnd(shape):
        return 0.02 * jax.random.normal(next(keys), shape, dtype=jnp.float32)

    zeros = lambda s: jnp.zeros(s, jnp.float32)
    ones = lambda s: jnp.ones(s, jnp.float32)

    # nn.Linear(2H, C): split along the concat axis into two (H, CP) halves,
    # lane-padded to CP=round_up(C,128); padded bias cols get -1e9 so they
    # vanish in softmax / are sliced off in the wrapper.
    wc_full = rnd((2 * H, C))
    wc1 = jnp.zeros((H, CP), jnp.float32).at[:, :C].set(wc_full[:H]).astype(jnp.bfloat16)
    wc2 = jnp.zeros((H, CP), jnp.float32).at[:, :C].set(wc_full[H:]).astype(jnp.bfloat16)
    bc = jnp.full((1, CP), NEG_INF, jnp.float32).at[:, :C].set(0.0)

    params = {
        "word_emb": rnd((vocab, H)).astype(jnp.bfloat16),
        "pos_emb": rnd((max_pos, H)).astype(jnp.bfloat16),
        "type_emb": rnd((type_vocab, H)).astype(jnp.bfloat16),
        "emb_ln_g": ones((1, H)), "emb_ln_b": zeros((1, H)),
        "layers": [],
        "wc1": wc1, "wc2": wc2, "bc": bc,
    }
    for _ in range(L):
        # fused Q|K|V projection; 1/sqrt(D) folded into the Q columns (and the
        # Q bias slots, trivially zero here) so the kernel skips the score scale.
        wqkv = rnd((H, 3 * H)).at[:, :H].multiply(scale)
        params["layers"].append({
            "wqkv": wqkv.astype(jnp.bfloat16), "bqkv": zeros((1, 3 * H)),
            "wo": rnd((H, H)).astype(jnp.bfloat16), "bo": zeros((1, H)),
            "ln1_g": ones((1, H)), "ln1_b": zeros((1, H)),
            "w1": rnd((H, I)).astype(jnp.bfloat16), "b1": zeros((1, I)),
            "w2": rnd((I, H)).astype(jnp.bfloat16), "b2": zeros((1, H)),
            "ln2_g": ones((1, H)), "ln2_b": zeros((1, H)),
        })
    return params


def build_entity_masks(entity_positions, S):
    """Spans -> one (B, 2P, S) bf16 mean-pooling mask (rows 0..P-1 = entity1)."""
    B = len(entity_positions)
    P = len(entity_positions[0])
    m = np.zeros((B, 2 * P, S), np.float32)
    for i, pairs in enumerate(entity_positions):
        for j, (p1, p2) in enumerate(pairs):
            m[i, j, p1[0]:p1[1]] = 1.0 / float(p1[1] - p1[0])
            m[i, P + j, p2[0]:p2[1]] = 1.0 / float(p2[1] - p2[0])
    return jnp.asarray(m, dtype=jnp.bfloat16)


def bert_relation_forward(params, input_ids, attention_mask, token_type_ids,
                          m_pool, labels_padded, *, num_heads, num_labels):
    B, S = input_ids.shape
    H = params["word_emb"].shape[1]
    NH = num_heads
    D = H // NH

    # embeddings (gathers are glue), pre-added in bf16, then Pallas LayerNorm
    emb = (jnp.take(params["word_emb"], input_ids, axis=0)
           + params["pos_emb"][None, :S, :]
           + jnp.take(params["type_emb"], token_type_ids, axis=0))
    x = layernorm(emb.reshape(B * S, H), params["emb_ln_g"], params["emb_ln_b"])

    add_mask = ((1.0 - attention_mask.astype(jnp.float32)) * NEG_INF)[:, None, :]

    for lyr in params["layers"]:
        qkv = matmul(x, lyr["wqkv"], lyr["bqkv"])                     # (B*S, 3H)
        qkv = qkv.reshape(B, S, 3, NH, D).transpose(2, 0, 3, 1, 4)    # head-major
        ctx = attention(qkv[0], qkv[1], qkv[2], add_mask)             # (B,NH,S,D)
        ctx = ctx.transpose(0, 2, 1, 3).reshape(B * S, H)
        # output projection + residual + LayerNorm fused
        x = matmul_residual_ln(ctx, lyr["wo"], lyr["bo"],
                               x, lyr["ln1_g"], lyr["ln1_b"])
        ffn = matmul(x, lyr["w1"], lyr["b1"], activation="gelu")      # (B*S, I)
        # FFN down projection + residual + LayerNorm fused
        x = matmul_residual_ln(ffn, lyr["w2"], lyr["b2"],
                               x, lyr["ln2_g"], lyr["ln2_b"])

    hidden = x.reshape(B, S, H)                                       # last_hidden_state
    logits_p, probs_p, loss_b = pool_and_classify(
        hidden, m_pool, params["wc1"], params["wc2"], params["bc"], labels_padded)

    logits = logits_p[:, :, :num_labels]
    probs = probs_p[:, :, :num_labels]
    predicted_labels = (probs > 0.5).astype(jnp.int32)   # [1 if p>0.5 else 0]
    # torch loop: loss = sum over (i, j) of CE(logits_ij, soft_target_ij)
    loss = jnp.sum(loss_b[:, 0, 0])
    return loss, predicted_labels, logits, probs


# --------------------------------- main -------------------------------------

if __name__ == "__main__":
    B, S, H, NH, L, I, C, P = 2, 8, 32, 4, 2, 64, 4, 2
    VOCAB, TYPE_VOCAB = 100, 2
    CP = _round_up(C, 128)

    key = jax.random.PRNGKey(0)
    k_params, k_ids, k_lab = jax.random.split(key, 3)

    params = init_params(k_params, vocab=VOCAB, max_pos=S, type_vocab=TYPE_VOCAB,
                         H=H, L=L, I=I, C=C, num_heads=NH)

    input_ids = jax.random.randint(k_ids, (B, S), 0, VOCAB, dtype=jnp.int32)
    attention_mask = jnp.ones((B, S), jnp.int32).at[1, S - 1:].set(0)
    token_type_ids = jnp.zeros((B, S), jnp.int32)

    # entity_positions[i][j] = ((e1_start, e1_end), (e2_start, e2_end))
    entity_positions = [
        [((1, 3), (4, 6)), ((0, 2), (5, 7))],
        [((2, 4), (5, 7)), ((1, 2), (3, 6))],
    ]
    m_pool = build_entity_masks(entity_positions, S)     # (B, 2P, S) bf16

    label_idx = jax.random.randint(k_lab, (B, P), 0, C, dtype=jnp.int32)
    labels = jax.nn.one_hot(label_idx, C, dtype=jnp.float32)   # float targets
    labels_padded = jnp.zeros((B, P, CP), jnp.float32).at[:, :, :C].set(labels)

    fwd = jax.jit(functools.partial(bert_relation_forward,
                                    num_heads=NH, num_labels=C))
    loss, predicted, logits, probs = fwd(params, input_ids, attention_mask,
                                         token_type_ids, m_pool, labels_padded)
    jax.block_until_ready((loss, predicted, logits, probs))
    print("KERNEL_OK")
</pallas_src>

<mosaic_0001>
module attributes {stable_mosaic.version = 11 : i64} {
  func.func @_matmul_kernel(%arg0: i32, %arg1: memref<16x32xbf16, #tpu.memory_space<vmem>>, %arg2: memref<32x96xbf16, #tpu.memory_space<vmem>>, %arg3: memref<1x96xf32, #tpu.memory_space<vmem>>, %arg4: memref<16x96xbf16, #tpu.memory_space<vmem>>) attributes {dimension_semantics = [#tpu.dimension_semantics<parallel>], iteration_bounds = array<i64: 1>, scalar_prefetch = 0 : i64, scratch_operands = 0 : i64, tpu.core_type = #tpu.core_type<tc>, window_params = [{transform_indices = @transform_0, window_bounds = array<i64: 16, 32>}, {pipeline_mode = #tpu.pipeline_mode<synchronous>, transform_indices = @transform_1, window_bounds = array<i64: 32, 96>}, {pipeline_mode = #tpu.pipeline_mode<synchronous>, transform_indices = @transform_2, window_bounds = array<i64: 1, 96>}, {transform_indices = @transform_3, window_bounds = array<i64: 16, 96>}]} {
    %c0 = arith.constant 0 : index
    %c0_0 = arith.constant 0 : index
    %0 = vector.load %arg1[%c0, %c0_0] : memref<16x32xbf16, #tpu.memory_space<vmem>>, vector<16x32xbf16>
    %c0_1 = arith.constant 0 : index
    %c0_2 = arith.constant 0 : index
    %1 = vector.load %arg2[%c0_1, %c0_2] : memref<32x96xbf16, #tpu.memory_space<vmem>>, vector<32x96xbf16>
    %cst = arith.constant dense<0.000000e+00> : vector<16x96xf32>
    %2 = tpu.matmul %0, %1, %cst {dimension_numbers = #tpu.dot_dimension_numbers<[1], [0], [0], [1], [0, 0, 1, 1], [], []>} : vector<16x32xbf16>, vector<32x96xbf16>, vector<16x96xf32> -> vector<16x96xf32>
    %c0_3 = arith.constant 0 : index
    %c0_4 = arith.constant 0 : index
    %3 = vector.load %arg3[%c0_3, %c0_4] : memref<1x96xf32, #tpu.memory_space<vmem>>, vector<1x96xf32>
    %4 = vector.broadcast %3 : vector<1x96xf32> to vector<16x96xf32>
    %5 = arith.addf %2, %4 : vector<16x96xf32>
    %6 = arith.truncf %5 : vector<16x96xf32> to vector<16x96xbf16>
    %c0_5 = arith.constant 0 : index
    %c0_6 = arith.constant 0 : index
    %7 = vector.load %arg4[%c0_5, %c0_6] : memref<16x96xbf16, #tpu.memory_space<vmem>>, vector<16x96xbf16>
    tpu.vector_store %arg4[%c0_5, %c0_6], %6 {strides = array<i32>} : memref<16x96xbf16, #tpu.memory_space<vmem>>, vector<16x96xbf16>,
    return
  }
  func.func @transform_0(%arg0: i32) -> (i32, i32) {
    %c0_i32 = arith.constant 0 : i32
    %c0_i32_0 = arith.constant 0 : i32
    return %arg0, %c0_i32 : i32, i32
  }
  func.func @transform_1(%arg0: i32) -> (i32, i32) {
    %c0_i32 = arith.constant 0 : i32
    %c0_i32_0 = arith.constant 0 : i32
    %c0_i32_1 = arith.constant 0 : i32
    return %c0_i32, %c0_i32_0 : i32, i32
  }
  func.func @transform_2(%arg0: i32) -> (i32, i32) {
    %c0_i32 = arith.constant 0 : i32
    %c0_i32_0 = arith.constant 0 : i32
    %c0_i32_1 = arith.constant 0 : i32
    return %c0_i32, %c0_i32_0 : i32, i32
  }
  func.func @transform_3(%arg0: i32) -> (i32, i32) {
    %c0_i32 = arith.constant 0 : i32
    %c0_i32_0 = arith.constant 0 : i32
    return %arg0, %c0_i32 : i32, i32
  }
}

module attributes {stable_mosaic.version = 11 : i64} {
  func.func @_ln_kernel(%arg0: i32, %arg1: memref<16x32xbf16, #tpu.memory_space<vmem>>, %arg2: memref<1x32xf32, #tpu.memory_space<vmem>>, %arg3: memref<1x32xf32, #tpu.memory_space<vmem>>, %arg4: memref<16x32xbf16, #tpu.memory_space<vmem>>) attributes {dimension_semantics = [#tpu.dimension_semantics<parallel>], iteration_bounds = array<i64: 1>, scalar_prefetch = 0 : i64, scratch_operands = 0 : i64, tpu.core_type = #tpu.core_type<tc>, window_params = [{transform_indices = @transform_0, window_bounds = array<i64: 16, 32>}, {pipeline_mode = #tpu.pipeline_mode<synchronous>, transform_indices = @transform_1, window_bounds = array<i64: 1, 32>}, {pipeline_mode = #tpu.pipeline_mode<synchronous>, transform_indices = @transform_2, window_bounds = array<i64: 1, 32>}, {transform_indices = @transform_3, window_bounds = array<i64: 16, 32>}]} {
    %c0 = arith.constant 0 : index
    %c0_0 = arith.constant 0 : index
    %0 = vector.load %arg1[%c0, %c0_0] : memref<16x32xbf16, #tpu.memory_space<vmem>>, vector<16x32xbf16>
    %1 = arith.extf %0 : vector<16x32xbf16> to vector<16x32xf32>
    %cst = arith.constant dense<0.000000e+00> : vector<16xf32>
    %2 = vector.multi_reduction <add>, %1, %cst [1] : vector<16x32xf32> to vector<16xf32>
    %3 = vector.shape_cast %2 : vector<16xf32> to vector<16x1xf32>
    %cst_1 = arith.constant 3.200000e+01 : f32
    %4 = vector.broadcast %cst_1 : f32 to vector<16x1xf32>
    %5 = arith.divf %3, %4 : vector<16x1xf32>
    %6 = vector.broadcast %5 : vector<16x1xf32> to vector<16x32xf32>
    %7 = arith.subf %1, %6 : vector<16x32xf32>
    %8 = arith.mulf %7, %7 : vector<16x32xf32>
    %cst_2 = arith.constant dense<0.000000e+00> : vector<16xf32>
    %9 = vector.multi_reduction <add>, %8, %cst_2 [1] : vector<16x32xf32> to vector<16xf32>
    %10 = vector.shape_cast %9 : vector<16xf32> to vector<16x1xf32>
    %cst_3 = arith.constant 3.200000e+01 : f32
    %11 = vector.broadcast %cst_3 : f32 to vector<16x1xf32>
    %12 = arith.divf %10, %11 : vector<16x1xf32>
    %cst_4 = arith.constant 9.99999996E-13 : f32
    %13 = vector.broadcast %cst_4 : f32 to vector<16x1xf32>
    %14 = arith.addf %12, %13 : vector<16x1xf32>
    %15 = math.rsqrt %14 : vector<16x1xf32>
    %16 = vector.broadcast %15 : vector<16x1xf32> to vector<16x32xf32>
    %17 = arith.mulf %7, %16 : vector<16x32xf32>
    %c0_5 = arith.constant 0 : index
    %c0_6 = arith.constant 0 : index
    %18 = vector.load %arg2[%c0_5, %c0_6] : memref<1x32xf32, #tpu.memory_space<vmem>>, vector<1x32xf32>
    %19 = vector.broadcast %18 : vector<1x32xf32> to vector<16x32xf32>
    %20 = arith.mulf %17, %19 : vector<16x32xf32>
    %c0_7 = arith.constant 0 : index
    %c0_8 = arith.constant 0 : index
    %21 = vector.load %arg3[%c0_7, %c0_8] : memref<1x32xf32, #tpu.memory_space<vmem>>, vector<1x32xf32>
    %22 = vector.broadcast %21 : vector<1x32xf32> to vector<16x32xf32>
    %23 = arith.addf %20, %22 : vector<16x32xf32>
    %24 = arith.truncf %23 : vector<16x32xf32> to vector<16x32xbf16>
    %c0_9 = arith.constant 0 : index
    %c0_10 = arith.constant 0 : index
    %25 = vector.load %arg4[%c0_9, %c0_10] : memref<16x32xbf16, #tpu.memory_space<vmem>>, vector<16x32xbf16>
    tpu.vector_store %arg4[%c0_9, %c0_10], %24 {strides = array<i32>} : memref<16x32xbf16, #tpu.memory_space<vmem>>, vector<16x32xbf16>,
    return
  }
  func.func @transform_0(%arg0: i32) -> (i32, i32) {
    %c0_i32 = arith.constant 0 : i32
    %c0_i32_0 = arith.constant 0 : i32
    return %arg0, %c0_i32 : i32, i32
  }
  func.func @transform_1(%arg0: i32) -> (i32, i32) {
    %c0_i32 = arith.constant 0 : i32
    %c0_i32_0 = arith.constant 0 : i32
    %c0_i32_1 = arith.constant 0 : i32
    return %c0_i32, %c0_i32_0 : i32, i32
  }
  func.func @transform_2(%arg0: i32) -> (i32, i32) {
    %c0_i32 = arith.constant 0 : i32
    %c0_i32_0 = arith.constant 0 : i32
    %c0_i32_1 = arith.constant 0 : i32
    return %c0_i32, %c0_i32_0 : i32, i32
  }
  func.func @transform_3(%arg0: i32) -> (i32, i32) {
    %c0_i32 = arith.constant 0 : i32
    %c0_i32_0 = arith.constant 0 : i32
    return %arg0, %c0_i32 : i32, i32
  }
}

module attributes {stable_mosaic.version = 11 : i64} {
  func.func @_attention_kernel(%arg0: i32, %arg1: i32, %arg2: memref<1x2x8x8xbf16, #tpu.memory_space<vmem>>, %arg3: memref<1x2x8x8xbf16, #tpu.memory_space<vmem>>, %arg4: memref<1x2x8x8xbf16, #tpu.memory_space<vmem>>, %arg5: memref<1x1x8xf32, #tpu.memory_space<vmem>>, %arg6: memref<1x2x8x8xbf16, #tpu.memory_space<vmem>>) attributes {dimension_semantics = [#tpu.dimension_semantics<parallel>, #tpu.dimension_semantics<parallel>], iteration_bounds = array<i64: 2, 2>, scalar_prefetch = 0 : i64, scratch_operands = 0 : i64, tpu.core_type = #tpu.core_type<tc>, window_params = [{transform_indices = @transform_0, window_bounds = array<i64: 1, 2, 8, 8>}, {transform_indices = @transform_1, window_bounds = array<i64: 1, 2, 8, 8>}, {transform_indices = @transform_2, window_bounds = array<i64: 1, 2, 8, 8>}, {transform_indices = @transform_3, window_bounds = array<i64: 1, 1, 8>}, {transform_indices = @transform_4, window_bounds = array<i64: 1, 2, 8, 8>}]} {
    %c0 = arith.constant 0 : index
    %c0_0 = arith.constant 0 : index
    %c0_1 = arith.constant 0 : index
    %c0_2 = arith.constant 0 : index
    %0 = vector.load %arg2[%c0, %c0_0, %c0_1, %c0_2] : memref<1x2x8x8xbf16, #tpu.memory_space<vmem>>, vector<1x2x8x8xbf16>
    %1 = vector.shape_cast %0 : vector<1x2x8x8xbf16> to vector<2x8x8xbf16>
    %c0_3 = arith.constant 0 : index
    %c0_4 = arith.constant 0 : index
    %c0_5 = arith.constant 0 : index
    %c0_6 = arith.constant 0 : index
    %2 = vector.load %arg3[%c0_3, %c0_4, %c0_5, %c0_6] : memref<1x2x8x8xbf16, #tpu.memory_space<vmem>>, vector<1x2x8x8xbf16>
    %3 = vector.shape_cast %2 : vector<1x2x8x8xbf16> to vector<2x8x8xbf16>
    %c0_7 = arith.constant 0 : index
    %c0_8 = arith.constant 0 : index
    %c0_9 = arith.constant 0 : index
    %c0_10 = arith.constant 0 : index
    %4 = vector.load %arg4[%c0_7, %c0_8, %c0_9, %c0_10] : memref<1x2x8x8xbf16, #tpu.memory_space<vmem>>, vector<1x2x8x8xbf16>
    %5 = vector.shape_cast %4 : vector<1x2x8x8xbf16> to vector<2x8x8xbf16>
    %c0_11 = arith.constant 0 : index
    %c0_12 = arith.constant 0 : index
    %c0_13 = arith.constant 0 : index
    %6 = vector.load %arg5[%c0_11, %c0_12, %c0_13] : memref<1x1x8xf32, #tpu.memory_space<vmem>>, vector<1x1x8xf32>
    %7 = vector.shape_cast %6 : vector<1x1x8xf32> to vector<1x8xf32>
    "tpu.trace_start"() <{level = 10 : i32, message = "hqd,hkd->hqk"}> : () -> ()
    %cst = arith.constant dense<0.000000e+00> : vector<2x8x8xf32>
    %8 = tpu.matmul %1, %3, %cst {dimension_numbers = #tpu.dot_dimension_numbers<[2], [2], [1], [1], [0, 0, 0, 1, 1, 1], [0], [0]>} : vector<2x8x8xbf16>, vector<2x8x8xbf16>, vector<2x8x8xf32> -> vector<2x8x8xf32>
    "tpu.trace_stop"() : () -> ()
    %9 = vector.shape_cast %7 : vector<1x8xf32> to vector<1x1x8xf32>
    %10 = vector.broadcast %9 : vector<1x1x8xf32> to vector<2x8x8xf32>
    %11 = arith.addf %8, %10 : vector<2x8x8xf32>
    %cst_14 = arith.constant dense<0xFF800000> : vector<2x8xf32>
    %12 = vector.multi_reduction <maximumf>, %11, %cst_14 [2] : vector<2x8x8xf32> to vector<2x8xf32>
    %13 = vector.shape_cast %12 : vector<2x8xf32> to vector<2x8x1xf32>
    %14 = vector.broadcast %13 : vector<2x8x1xf32> to vector<2x8x8xf32>
    %15 = arith.subf %11, %14 : vector<2x8x8xf32>
    %16 = math.exp %15 : vector<2x8x8xf32>
    %cst_15 = arith.constant dense<0.000000e+00> : vector<2x8xf32>
    %17 = vector.multi_reduction <add>, %16, %cst_15 [2] : vector<2x8x8xf32> to vector<2x8xf32>
    %18 = vector.shape_cast %17 : vector<2x8xf32> to vector<2x8x1xf32>
    %19 = tpu.reciprocal %18 {approx = true} : vector<2x8x1xf32> -> vector<2x8x1xf32>
    %20 = vector.broadcast %19 : vector<2x8x1xf32> to vector<2x8x8xf32>
    %21 = arith.mulf %16, %20 : vector<2x8x8xf32>
    %22 = arith.truncf %21 : vector<2x8x8xf32> to vector<2x8x8xbf16>
    "tpu.trace_start"() <{level = 10 : i32, message = "hqk,hkd->hqd"}> : () -> ()
    %cst_16 = arith.constant dense<0.000000e+00> : vector<2x8x8xf32>
    %23 = tpu.matmul %22, %5, %cst_16 {dimension_numbers = #tpu.dot_dimension_numbers<[2], [1], [1], [2], [0, 0, 0, 1, 1, 2], [0], [0]>} : vector<2x8x8xbf16>, vector<2x8x8xbf16>, vector<2x8x8xf32> -> vector<2x8x8xf32>
    "tpu.trace_stop"() : () -> ()
    %24 = arith.truncf %23 : vector<2x8x8xf32> to vector<2x8x8xbf16>
    %c0_17 = arith.constant 0 : index
    %c0_18 = arith.constant 0 : index
    %c0_19 = arith.constant 0 : index
    %c0_20 = arith.constant 0 : index
    %25 = vector.load %arg6[%c0_17, %c0_18, %c0_19, %c0_20] : memref<1x2x8x8xbf16, #tpu.memory_space<vmem>>, vector<1x2x8x8xbf16>
    %26 = vector.shape_cast %25 : vector<1x2x8x8xbf16> to vector<2x8x8xbf16>
    %27 = vector.shape_cast %24 : vector<2x8x8xbf16> to vector<1x2x8x8xbf16>
    tpu.vector_store %arg6[%c0_17, %c0_18, %c0_19, %c0_20], %27 {strides = array<i32>} : memref<1x2x8x8xbf16, #tpu.memory_space<vmem>>, vector<1x2x8x8xbf16>,
    return
  }
  func.func @transform_0(%arg0: i32, %arg1: i32) -> (i32, i32, i32, i32) {
    %c0_i32 = arith.constant 0 : i32
    %c0_i32_0 = arith.constant 0 : i32
    %c0_i32_1 = arith.constant 0 : i32
    return %arg0, %arg1, %c0_i32, %c0_i32_0 : i32, i32, i32, i32
  }
  func.func @transform_1(%arg0: i32, %arg1: i32) -> (i32, i32, i32, i32) {
    %c0_i32 = arith.constant 0 : i32
    %c0_i32_0 = arith.constant 0 : i32
    %c0_i32_1 = arith.constant 0 : i32
    return %arg0, %arg1, %c0_i32, %c0_i32_0 : i32, i32, i32, i32
  }
  func.func @transform_2(%arg0: i32, %arg1: i32) -> (i32, i32, i32, i32) {
    %c0_i32 = arith.constant 0 : i32
    %c0_i32_0 = arith.constant 0 : i32
    %c0_i32_1 = arith.constant 0 : i32
    return %arg0, %arg1, %c0_i32, %c0_i32_0 : i32, i32, i32, i32
  }
  func.func @transform_3(%arg0: i32, %arg1: i32) -> (i32, i32, i32) {
    %c0_i32 = arith.constant 0 : i32
    %c0_i32_0 = arith.constant 0 : i32
    %c0_i32_1 = arith.constant 0 : i32
    return %arg0, %c0_i32, %c0_i32_0 : i32, i32, i32
  }
  func.func @transform_4(%arg0: i32, %arg1: i32) -> (i32, i32, i32, i32) {
    %c0_i32 = arith.constant 0 : i32
    %c0_i32_0 = arith.constant 0 : i32
    %c0_i32_1 = arith.constant 0 : i32
    return %arg0, %arg1, %c0_i32, %c0_i32_0 : i32, i32, i32, i32
  }
}

module attributes {stable_mosaic.version = 11 : i64} {
  func.func @_matmul_res_ln_kernel(%arg0: i32, %arg1: memref<16x32xbf16, #tpu.memory_space<vmem>>, %arg2: memref<32x32xbf16, #tpu.memory_space<vmem>>, %arg3: memref<1x32xf32, #tpu.memory_space<vmem>>, %arg4: memref<16x32xbf16, #tpu.memory_space<vmem>>, %arg5: memref<1x32xf32, #tpu.memory_space<vmem>>, %arg6: memref<1x32xf32, #tpu.memory_space<vmem>>, %arg7: memref<16x32xbf16, #tpu.memory_space<vmem>>) attributes {dimension_semantics = [#tpu.dimension_semantics<parallel>], iteration_bounds = array<i64: 1>, scalar_prefetch = 0 : i64, scratch_operands = 0 : i64, tpu.core_type = #tpu.core_type<tc>, window_params = [{transform_indices = @transform_0, window_bounds = array<i64: 16, 32>}, {pipeline_mode = #tpu.pipeline_mode<synchronous>, transform_indices = @transform_1, window_bounds = array<i64: 32, 32>}, {pipeline_mode = #tpu.pipeline_mode<synchronous>, transform_indices = @transform_2, window_bounds = array<i64: 1, 32>}, {transform_indices = @transform_3, window_bounds = array<i64: 16, 32>}, {pipeline_mode = #tpu.pipeline_mode<synchronous>, transform_indices = @transform_4, window_bounds = array<i64: 1, 32>}, {pipeline_mode = #tpu.pipeline_mode<synchronous>, transform_indices = @transform_5, window_bounds = array<i64: 1, 32>}, {transform_indices = @transform_6, window_bounds = array<i64: 16, 32>}]} {
    %c0 = arith.constant 0 : index
    %c0_0 = arith.constant 0 : index
    %0 = vector.load %arg1[%c0, %c0_0] : memref<16x32xbf16, #tpu.memory_space<vmem>>, vector<16x32xbf16>
    %c0_1 = arith.constant 0 : index
    %c0_2 = arith.constant 0 : index
    %1 = vector.load %arg2[%c0_1, %c0_2] : memref<32x32xbf16, #tpu.memory_space<vmem>>, vector<32x32xbf16>
    %cst = arith.constant dense<0.000000e+00> : vector<16x32xf32>
    %2 = tpu.matmul %0, %1, %cst {dimension_numbers = #tpu.dot_dimension_numbers<[1], [0], [0], [1], [0, 0, 1, 1], [], []>} : vector<16x32xbf16>, vector<32x32xbf16>, vector<16x32xf32> -> vector<16x32xf32>
    %c0_3 = arith.constant 0 : index
    %c0_4 = arith.constant 0 : index
    %3 = vector.load %arg3[%c0_3, %c0_4] : memref<1x32xf32, #tpu.memory_space<vmem>>, vector<1x32xf32>
    %4 = vector.broadcast %3 : vector<1x32xf32> to vector<16x32xf32>
    %5 = arith.addf %2, %4 : vector<16x32xf32>
    %c0_5 = arith.constant 0 : index
    %c0_6 = arith.constant 0 : index
    %6 = vector.load %arg4[%c0_5, %c0_6] : memref<16x32xbf16, #tpu.memory_space<vmem>>, vector<16x32xbf16>
    %7 = arith.extf %6 : vector<16x32xbf16> to vector<16x32xf32>
    %8 = arith.addf %5, %7 : vector<16x32xf32>
    %cst_7 = arith.constant dense<0.000000e+00> : vector<16xf32>
    %9 = vector.multi_reduction <add>, %8, %cst_7 [1] : vector<16x32xf32> to vector<16xf32>
    %10 = vector.shape_cast %9 : vector<16xf32> to vector<16x1xf32>
    %cst_8 = arith.constant 3.200000e+01 : f32
    %11 = vector.broadcast %cst_8 : f32 to vector<16x1xf32>
    %12 = arith.divf %10, %11 : vector<16x1xf32>
    %13 = vector.broadcast %12 : vector<16x1xf32> to vector<16x32xf32>
    %14 = arith.subf %8, %13 : vector<16x32xf32>
    %15 = arith.mulf %14, %14 : vector<16x32xf32>
    %cst_9 = arith.constant dense<0.000000e+00> : vector<16xf32>
    %16 = vector.multi_reduction <add>, %15, %cst_9 [1] : vector<16x32xf32> to vector<16xf32>
    %17 = vector.shape_cast %16 : vector<16xf32> to vector<16x1xf32>
    %cst_10 = arith.constant 3.200000e+01 : f32
    %18 = vector.broadcast %cst_10 : f32 to vector<16x1xf32>
    %19 = arith.divf %17, %18 : vector<16x1xf32>
    %cst_11 = arith.constant 9.99999996E-13 : f32
    %20 = vector.broadcast %cst_11 : f32 to vector<16x1xf32>
    %21 = arith.addf %19, %20 : vector<16x1xf32>
    %22 = math.rsqrt %21 : vector<16x1xf32>
    %23 = vector.broadcast %22 : vector<16x1xf32> to vector<16x32xf32>
    %24 = arith.mulf %14, %23 : vector<16x32xf32>
    %c0_12 = arith.constant 0 : index
    %c0_13 = arith.constant 0 : index
    %25 = vector.load %arg5[%c0_12, %c0_13] : memref<1x32xf32, #tpu.memory_space<vmem>>, vector<1x32xf32>
    %26 = vector.broadcast %25 : vector<1x32xf32> to vector<16x32xf32>
    %27 = arith.mulf %24, %26 : vector<16x32xf32>
    %c0_14 = arith.constant 0 : index
    %c0_15 = arith.constant 0 : index
    %28 = vector.load %arg6[%c0_14, %c0_15] : memref<1x32xf32, #tpu.memory_space<vmem>>, vector<1x32xf32>
    %29 = vector.broadcast %28 : vector<1x32xf32> to vector<16x32xf32>
    %30 = arith.addf %27, %29 : vector<16x32xf32>
    %31 = arith.truncf %30 : vector<16x32xf32> to vector<16x32xbf16>
    %c0_16 = arith.constant 0 : index
    %c0_17 = arith.constant 0 : index
    %32 = vector.load %arg7[%c0_16, %c0_17] : memref<16x32xbf16, #tpu.memory_space<vmem>>, vector<16x32xbf16>
    tpu.vector_store %arg7[%c0_16, %c0_17], %31 {strides = array<i32>} : memref<16x32xbf16, #tpu.memory_space<vmem>>, vector<16x32xbf16>,
    return
  }
  func.func @transform_0(%arg0: i32) -> (i32, i32) {
    %c0_i32 = arith.constant 0 : i32
    %c0_i32_0 = arith.constant 0 : i32
    return %arg0, %c0_i32 : i32, i32
  }
  func.func @transform_1(%arg0: i32) -> (i32, i32) {
    %c0_i32 = arith.constant 0 : i32
    %c0_i32_0 = arith.constant 0 : i32
    %c0_i32_1 = arith.constant 0 : i32
    return %c0_i32, %c0_i32_0 : i32, i32
  }
  func.func @transform_2(%arg0: i32) -> (i32, i32) {
    %c0_i32 = arith.constant 0 : i32
    %c0_i32_0 = arith.constant 0 : i32
    %c0_i32_1 = arith.constant 0 : i32
    return %c0_i32, %c0_i32_0 : i32, i32
  }
  func.func @transform_3(%arg0: i32) -> (i32, i32) {
    %c0_i32 = arith.constant 0 : i32
    %c0_i32_0 = arith.constant 0 : i32
    return %arg0, %c0_i32 : i32, i32
  }
  func.func @transform_4(%arg0: i32) -> (i32, i32) {
    %c0_i32 = arith.constant 0 : i32
    %c0_i32_0 = arith.constant 0 : i32
    %c0_i32_1 = arith.constant 0 : i32
    return %c0_i32, %c0_i32_0 : i32, i32
  }
  func.func @transform_5(%arg0: i32) -> (i32, i32) {
    %c0_i32 = arith.constant 0 : i32
    %c0_i32_0 = arith.constant 0 : i32
    %c0_i32_1 = arith.constant 0 : i32
    return %c0_i32, %c0_i32_0 : i32, i32
  }
  func.func @transform_6(%arg0: i32) -> (i32, i32) {
    %c0_i32 = arith.constant 0 : i32
    %c0_i32_0 = arith.constant 0 : i32
    return %arg0, %c0_i32 : i32, i32
  }
}

module attributes {stable_mosaic.version = 11 : i64} {
  func.func @_matmul_kernel(%arg0: i32, %arg1: memref<16x32xbf16, #tpu.memory_space<vmem>>, %arg2: memref<32x64xbf16, #tpu.memory_space<vmem>>, %arg3: memref<1x64xf32, #tpu.memory_space<vmem>>, %arg4: memref<16x64xbf16, #tpu.memory_space<vmem>>) attributes {dimension_semantics = [#tpu.dimension_semantics<parallel>], iteration_bounds = array<i64: 1>, scalar_prefetch = 0 : i64, scratch_operands = 0 : i64, tpu.core_type = #tpu.core_type<tc>, window_params = [{transform_indices = @transform_0, window_bounds = array<i64: 16, 32>}, {pipeline_mode = #tpu.pipeline_mode<synchronous>, transform_indices = @transform_1, window_bounds = array<i64: 32, 64>}, {pipeline_mode = #tpu.pipeline_mode<synchronous>, transform_indices = @transform_2, window_bounds = array<i64: 1, 64>}, {transform_indices = @transform_3, window_bounds = array<i64: 16, 64>}]} {
    %c0 = arith.constant 0 : index
    %c0_0 = arith.constant 0 : index
    %0 = vector.load %arg1[%c0, %c0_0] : memref<16x32xbf16, #tpu.memory_space<vmem>>, vector<16x32xbf16>
    %c0_1 = arith.constant 0 : index
    %c0_2 = arith.constant 0 : index
    %1 = vector.load %arg2[%c0_1, %c0_2] : memref<32x64xbf16, #tpu.memory_space<vmem>>, vector<32x64xbf16>
    %cst = arith.constant dense<0.000000e+00> : vector<16x64xf32>
    %2 = tpu.matmul %0, %1, %cst {dimension_numbers = #tpu.dot_dimension_numbers<[1], [0], [0], [1], [0, 0, 1, 1], [], []>} : vector<16x32xbf16>, vector<32x64xbf16>, vector<16x64xf32> -> vector<16x64xf32>
    %c0_3 = arith.constant 0 : index
    %c0_4 = arith.constant 0 : index
    %3 = vector.load %arg3[%c0_3, %c0_4] : memref<1x64xf32, #tpu.memory_space<vmem>>, vector<1x64xf32>
    %4 = vector.broadcast %3 : vector<1x64xf32> to vector<16x64xf32>
    %5 = arith.addf %2, %4 : vector<16x64xf32>
    %cst_5 = arith.constant 5.000000e-01 : f32
    %6 = vector.broadcast %cst_5 : f32 to vector<16x64xf32>
    %7 = arith.mulf %6, %5 : vector<16x64xf32>
    %cst_6 = arith.constant 4.471500e-02 : f32
    %8 = vector.broadcast %cst_6 : f32 to vector<16x64xf32>
    %9 = arith.mulf %8, %5 : vector<16x64xf32>
    %10 = arith.mulf %9, %5 : vector<16x64xf32>
    %11 = arith.mulf %10, %5 : vector<16x64xf32>
    %12 = arith.addf %5, %11 : vector<16x64xf32>
    %cst_7 = arith.constant 0.797884583 : f32
    %13 = vector.broadcast %cst_7 : f32 to vector<16x64xf32>
    %14 = arith.mulf %13, %12 : vector<16x64xf32>
    %15 = math.tanh %14 : vector<16x64xf32>
    %cst_8 = arith.constant 1.000000e+00 : f32
    %16 = vector.broadcast %cst_8 : f32 to vector<16x64xf32>
    %17 = arith.addf %16, %15 : vector<16x64xf32>
    %18 = arith.mulf %7, %17 : vector<16x64xf32>
    %19 = arith.truncf %18 : vector<16x64xf32> to vector<16x64xbf16>
    %c0_9 = arith.constant 0 : index
    %c0_10 = arith.constant 0 : index
    %20 = vector.load %arg4[%c0_9, %c0_10] : memref<16x64xbf16, #tpu.memory_space<vmem>>, vector<16x64xbf16>
    tpu.vector_store %arg4[%c0_9, %c0_10], %19 {strides = array<i32>} : memref<16x64xbf16, #tpu.memory_space<vmem>>, vector<16x64xbf16>,
    return
  }
  func.func @transform_0(%arg0: i32) -> (i32, i32) {
    %c0_i32 = arith.constant 0 : i32
    %c0_i32_0 = arith.constant 0 : i32
    return %arg0, %c0_i32 : i32, i32
  }
  func.func @transform_1(%arg0: i32) -> (i32, i32) {
    %c0_i32 = arith.constant 0 : i32
    %c0_i32_0 = arith.constant 0 : i32
    %c0_i32_1 = arith.constant 0 : i32
    return %c0_i32, %c0_i32_0 : i32, i32
  }
  func.func @transform_2(%arg0: i32) -> (i32, i32) {
    %c0_i32 = arith.constant 0 : i32
    %c0_i32_0 = arith.constant 0 : i32
    %c0_i32_1 = arith.constant 0 : i32
    return %c0_i32, %c0_i32_0 : i32, i32
  }
  func.func @transform_3(%arg0: i32) -> (i32, i32) {
    %c0_i32 = arith.constant 0 : i32
    %c0_i32_0 = arith.constant 0 : i32
    return %arg0, %c0_i32 : i32, i32
  }
}

module attributes {stable_mosaic.version = 11 : i64} {
  func.func @_matmul_res_ln_kernel(%arg0: i32, %arg1: memref<16x64xbf16, #tpu.memory_space<vmem>>, %arg2: memref<64x32xbf16, #tpu.memory_space<vmem>>, %arg3: memref<1x32xf32, #tpu.memory_space<vmem>>, %arg4: memref<16x32xbf16, #tpu.memory_space<vmem>>, %arg5: memref<1x32xf32, #tpu.memory_space<vmem>>, %arg6: memref<1x32xf32, #tpu.memory_space<vmem>>, %arg7: memref<16x32xbf16, #tpu.memory_space<vmem>>) attributes {dimension_semantics = [#tpu.dimension_semantics<parallel>], iteration_bounds = array<i64: 1>, scalar_prefetch = 0 : i64, scratch_operands = 0 : i64, tpu.core_type = #tpu.core_type<tc>, window_params = [{transform_indices = @transform_0, window_bounds = array<i64: 16, 64>}, {pipeline_mode = #tpu.pipeline_mode<synchronous>, transform_indices = @transform_1, window_bounds = array<i64: 64, 32>}, {pipeline_mode = #tpu.pipeline_mode<synchronous>, transform_indices = @transform_2, window_bounds = array<i64: 1, 32>}, {transform_indices = @transform_3, window_bounds = array<i64: 16, 32>}, {pipeline_mode = #tpu.pipeline_mode<synchronous>, transform_indices = @transform_4, window_bounds = array<i64: 1, 32>}, {pipeline_mode = #tpu.pipeline_mode<synchronous>, transform_indices = @transform_5, window_bounds = array<i64: 1, 32>}, {transform_indices = @transform_6, window_bounds = array<i64: 16, 32>}]} {
    %c0 = arith.constant 0 : index
    %c0_0 = arith.constant 0 : index
    %0 = vector.load %arg1[%c0, %c0_0] : memref<16x64xbf16, #tpu.memory_space<vmem>>, vector<16x64xbf16>
    %c0_1 = arith.constant 0 : index
    %c0_2 = arith.constant 0 : index
    %1 = vector.load %arg2[%c0_1, %c0_2] : memref<64x32xbf16, #tpu.memory_space<vmem>>, vector<64x32xbf16>
    %cst = arith.constant dense<0.000000e+00> : vector<16x32xf32>
    %2 = tpu.matmul %0, %1, %cst {dimension_numbers = #tpu.dot_dimension_numbers<[1], [0], [0], [1], [0, 0, 1, 1], [], []>} : vector<16x64xbf16>, vector<64x32xbf16>, vector<16x32xf32> -> vector<16x32xf32>
    %c0_3 = arith.constant 0 : index
    %c0_4 = arith.constant 0 : index
    %3 = vector.load %arg3[%c0_3, %c0_4] : memref<1x32xf32, #tpu.memory_space<vmem>>, vector<1x32xf32>
    %4 = vector.broadcast %3 : vector<1x32xf32> to vector<16x32xf32>
    %5 = arith.addf %2, %4 : vector<16x32xf32>
    %c0_5 = arith.constant 0 : index
    %c0_6 = arith.constant 0 : index
    %6 = vector.load %arg4[%c0_5, %c0_6] : memref<16x32xbf16, #tpu.memory_space<vmem>>, vector<16x32xbf16>
    %7 = arith.extf %6 : vector<16x32xbf16> to vector<16x32xf32>
    %8 = arith.addf %5, %7 : vector<16x32xf32>
    %cst_7 = arith.constant dense<0.000000e+00> : vector<16xf32>
    %9 = vector.multi_reduction <add>, %8, %cst_7 [1] : vector<16x32xf32> to vector<16xf32>
    %10 = vector.shape_cast %9 : vector<16xf32> to vector<16x1xf32>
    %cst_8 = arith.constant 3.200000e+01 : f32
    %11 = vector.broadcast %cst_8 : f32 to vector<16x1xf32>
    %12 = arith.divf %10, %11 : vector<16x1xf32>
    %13 = vector.broadcast %12 : vector<16x1xf32> to vector<16x32xf32>
    %14 = arith.subf %8, %13 : vector<16x32xf32>
    %15 = arith.mulf %14, %14 : vector<16x32xf32>
    %cst_9 = arith.constant dense<0.000000e+00> : vector<16xf32>
    %16 = vector.multi_reduction <add>, %15, %cst_9 [1] : vector<16x32xf32> to vector<16xf32>
    %17 = vector.shape_cast %16 : vector<16xf32> to vector<16x1xf32>
    %cst_10 = arith.constant 3.200000e+01 : f32
    %18 = vector.broadcast %cst_10 : f32 to vector<16x1xf32>
    %19 = arith.divf %17, %18 : vector<16x1xf32>
    %cst_11 = arith.constant 9.99999996E-13 : f32
    %20 = vector.broadcast %cst_11 : f32 to vector<16x1xf32>
    %21 = arith.addf %19, %20 : vector<16x1xf32>
    %22 = math.rsqrt %21 : vector<16x1xf32>
    %23 = vector.broadcast %22 : vector<16x1xf32> to vector<16x32xf32>
    %24 = arith.mulf %14, %23 : vector<16x32xf32>
    %c0_12 = arith.constant 0 : index
    %c0_13 = arith.constant 0 : index
    %25 = vector.load %arg5[%c0_12, %c0_13] : memref<1x32xf32, #tpu.memory_space<vmem>>, vector<1x32xf32>
    %26 = vector.broadcast %25 : vector<1x32xf32> to vector<16x32xf32>
    %27 = arith.mulf %24, %26 : vector<16x32xf32>
    %c0_14 = arith.constant 0 : index
    %c0_15 = arith.constant 0 : index
    %28 = vector.load %arg6[%c0_14, %c0_15] : memref<1x32xf32, #tpu.memory_space<vmem>>, vector<1x32xf32>
    %29 = vector.broadcast %28 : vector<1x32xf32> to vector<16x32xf32>
    %30 = arith.addf %27, %29 : vector<16x32xf32>
    %31 = arith.truncf %30 : vector<16x32xf32> to vector<16x32xbf16>
    %c0_16 = arith.constant 0 : index
    %c0_17 = arith.constant 0 : index
    %32 = vector.load %arg7[%c0_16, %c0_17] : memref<16x32xbf16, #tpu.memory_space<vmem>>, vector<16x32xbf16>
    tpu.vector_store %arg7[%c0_16, %c0_17], %31 {strides = array<i32>} : memref<16x32xbf16, #tpu.memory_space<vmem>>, vector<16x32xbf16>,
    return
  }
  func.func @transform_0(%arg0: i32) -> (i32, i32) {
    %c0_i32 = arith.constant 0 : i32
    %c0_i32_0 = arith.constant 0 : i32
    return %arg0, %c0_i32 : i32, i32
  }
  func.func @transform_1(%arg0: i32) -> (i32, i32) {
    %c0_i32 = arith.constant 0 : i32
    %c0_i32_0 = arith.constant 0 : i32
    %c0_i32_1 = arith.constant 0 : i32
    return %c0_i32, %c0_i32_0 : i32, i32
  }
  func.func @transform_2(%arg0: i32) -> (i32, i32) {
    %c0_i32 = arith.constant 0 : i32
    %c0_i32_0 = arith.constant 0 : i32
    %c0_i32_1 = arith.constant 0 : i32
    return %c0_i32, %c0_i32_0 : i32, i32
  }
  func.func @transform_3(%arg0: i32) -> (i32, i32) {
    %c0_i32 = arith.constant 0 : i32
    %c0_i32_0 = arith.constant 0 : i32
    return %arg0, %c0_i32 : i32, i32
  }
  func.func @transform_4(%arg0: i32) -> (i32, i32) {
    %c0_i32 = arith.constant 0 : i32
    %c0_i32_0 = arith.constant 0 : i32
    %c0_i32_1 = arith.constant 0 : i32
    return %c0_i32, %c0_i32_0 : i32, i32
  }
  func.func @transform_5(%arg0: i32) -> (i32, i32) {
    %c0_i32 = arith.constant 0 : i32
    %c0_i32_0 = arith.constant 0 : i32
    %c0_i32_1 = arith.constant 0 : i32
    return %c0_i32, %c0_i32_0 : i32, i32
  }
  func.func @transform_6(%arg0: i32) -> (i32, i32) {
    %c0_i32 = arith.constant 0 : i32
    %c0_i32_0 = arith.constant 0 : i32
    return %arg0, %c0_i32 : i32, i32
  }
}

module attributes {stable_mosaic.version = 11 : i64} {
  func.func @_pool_classify_kernel(%arg0: i32, %arg1: memref<1x8x32xbf16, #tpu.memory_space<vmem>>, %arg2: memref<1x4x8xbf16, #tpu.memory_space<vmem>>, %arg3: memref<32x128xbf16, #tpu.memory_space<vmem>>, %arg4: memref<32x128xbf16, #tpu.memory_space<vmem>>, %arg5: memref<1x128xf32, #tpu.memory_space<vmem>>, %arg6: memref<1x2x128xf32, #tpu.memory_space<vmem>>, %arg7: memref<1x2x128xf32, #tpu.memory_space<vmem>>, %arg8: memref<1x2x128xf32, #tpu.memory_space<vmem>>, %arg9: memref<1x1x128xf32, #tpu.memory_space<vmem>>) attributes {dimension_semantics = [#tpu.dimension_semantics<parallel>], iteration_bounds = array<i64: 2>, scalar_prefetch = 0 : i64, scratch_operands = 0 : i64, tpu.core_type = #tpu.core_type<tc>, window_params = [{transform_indices = @transform_0, window_bounds = array<i64: 1, 8, 32>}, {transform_indices = @transform_1, window_bounds = array<i64: 1, 4, 8>}, {pipeline_mode = #tpu.pipeline_mode<synchronous>, transform_indices = @transform_2, window_bounds = array<i64: 32, 128>}, {pipeline_mode = #tpu.pipeline_mode<synchronous>, transform_indices = @transform_3, window_bounds = array<i64: 32, 128>}, {pipeline_mode = #tpu.pipeline_mode<synchronous>, transform_indices = @transform_4, window_bounds = array<i64: 1, 128>}, {transform_indices = @transform_5, window_bounds = array<i64: 1, 2, 128>}, {transform_indices = @transform_6, window_bounds = array<i64: 1, 2, 128>}, {transform_indices = @transform_7, window_bounds = array<i64: 1, 2, 128>}, {transform_indices = @transform_8, window_bounds = array<i64: 1, 1, 128>}]} {
    %c0 = arith.constant 0 : index
    %c0_0 = arith.constant 0 : index
    %c0_1 = arith.constant 0 : index
    %0 = vector.load %arg1[%c0, %c0_0, %c0_1] : memref<1x8x32xbf16, #tpu.memory_space<vmem>>, vector<1x8x32xbf16>
    %1 = vector.shape_cast %0 : vector<1x8x32xbf16> to vector<8x32xbf16>
    %c0_2 = arith.constant 0 : index
    %c0_3 = arith.constant 0 : index
    %c0_4 = arith.constant 0 : index
    %2 = vector.load %arg2[%c0_2, %c0_3, %c0_4] : memref<1x4x8xbf16, #tpu.memory_space<vmem>>, vector<1x4x8xbf16>
    %3 = vector.shape_cast %2 : vector<1x4x8xbf16> to vector<4x8xbf16>
    %cst = arith.constant dense<0.000000e+00> : vector<4x32xf32>
    %4 = tpu.matmul %3, %1, %cst {dimension_numbers = #tpu.dot_dimension_numbers<[1], [0], [0], [1], [0, 0, 1, 1], [], []>} : vector<4x8xbf16>, vector<8x32xbf16>, vector<4x32xf32> -> vector<4x32xf32>
    %5 = vector.extract_strided_slice %4 {offsets = [0, 0], sizes = [2, 32], strides = [1, 1]} : vector<4x32xf32> to vector<2x32xf32>
    %6 = arith.truncf %5 : vector<2x32xf32> to vector<2x32xbf16>
    %7 = vector.extract_strided_slice %4 {offsets = [2, 0], sizes = [2, 32], strides = [1, 1]} : vector<4x32xf32> to vector<2x32xf32>
    %8 = arith.truncf %7 : vector<2x32xf32> to vector<2x32xbf16>
    %c0_5 = arith.constant 0 : index
    %c0_6 = arith.constant 0 : index
    %9 = vector.load %arg3[%c0_5, %c0_6] : memref<32x128xbf16, #tpu.memory_space<vmem>>, vector<32x128xbf16>
    %cst_7 = arith.constant dense<0.000000e+00> : vector<2x128xf32>
    %10 = tpu.matmul %6, %9, %cst_7 {dimension_numbers = #tpu.dot_dimension_numbers<[1], [0], [0], [1], [0, 0, 1, 1], [], []>} : vector<2x32xbf16>, vector<32x128xbf16>, vector<2x128xf32> -> vector<2x128xf32>
    %c0_8 = arith.constant 0 : index
    %c0_9 = arith.constant 0 : index
    %11 = vector.load %arg4[%c0_8, %c0_9] : memref<32x128xbf16, #tpu.memory_space<vmem>>, vector<32x128xbf16>
    %cst_10 = arith.constant dense<0.000000e+00> : vector<2x128xf32>
    %12 = tpu.matmul %8, %11, %cst_10 {dimension_numbers = #tpu.dot_dimension_numbers<[1], [0], [0], [1], [0, 0, 1, 1], [], []>} : vector<2x32xbf16>, vector<32x128xbf16>, vector<2x128xf32> -> vector<2x128xf32>
    %13 = arith.addf %10, %12 : vector<2x128xf32>
    %c0_11 = arith.constant 0 : index
    %c0_12 = arith.constant 0 : index
    %14 = vector.load %arg5[%c0_11, %c0_12] : memref<1x128xf32, #tpu.memory_space<vmem>>, vector<1x128xf32>
    %15 = vector.broadcast %14 : vector<1x128xf32> to vector<2x128xf32>
    %16 = arith.addf %13, %15 : vector<2x128xf32>
    %c0_13 = arith.constant 0 : index
    %c0_14 = arith.constant 0 : index
    %c0_15 = arith.constant 0 : index
    %17 = vector.load %arg7[%c0_13, %c0_14, %c0_15] : memref<1x2x128xf32, #tpu.memory_space<vmem>>, vector<1x2x128xf32>
    %18 = vector.shape_cast %17 : vector<1x2x128xf32> to vector<2x128xf32>
    %19 = vector.shape_cast %16 : vector<2x128xf32> to vector<1x2x128xf32>
    tpu.vector_store %arg7[%c0_13, %c0_14, %c0_15], %19 {strides = array<i32>} : memref<1x2x128xf32, #tpu.memory_space<vmem>>, vector<1x2x128xf32>,
    %cst_16 = arith.constant -3.000000e+01 : f32
    %cst_17 = arith.constant 3.000000e+01 : f32
    %20 = vector.broadcast %cst_16 : f32 to vector<2x128xf32>
    %21 = arith.maximumf %20, %16 : vector<2x128xf32>
    %22 = vector.broadcast %cst_17 : f32 to vector<2x128xf32>
    %23 = arith.minimumf %22, %21 : vector<2x128xf32>
    %cst_18 = arith.constant 0.000000e+00 : f32
    %24 = vector.broadcast %cst_18 : f32 to vector<2x128xf32>
    %25 = arith.subf %24, %23 : vector<2x128xf32>
    %26 = math.exp %25 : vector<2x128xf32>
    %cst_19 = arith.constant 1.000000e+00 : f32
    %27 = vector.broadcast %cst_19 : f32 to vector<2x128xf32>
    %28 = arith.addf %27, %26 : vector<2x128xf32>
    %cst_20 = arith.constant 1.000000e+00 : f32
    %29 = vector.broadcast %cst_20 : f32 to vector<2x128xf32>
    %30 = arith.divf %29, %28 : vector<2x128xf32>
    %c0_21 = arith.constant 0 : index
    %c0_22 = arith.constant 0 : index
    %c0_23 = arith.constant 0 : index
    %31 = vector.load %arg8[%c0_21, %c0_22, %c0_23] : memref<1x2x128xf32, #tpu.memory_space<vmem>>, vector<1x2x128xf32>
    %32 = vector.shape_cast %31 : vector<1x2x128xf32> to vector<2x128xf32>
    %33 = vector.shape_cast %30 : vector<2x128xf32> to vector<1x2x128xf32>
    tpu.vector_store %arg8[%c0_21, %c0_22, %c0_23], %33 {strides = array<i32>} : memref<1x2x128xf32, #tpu.memory_space<vmem>>, vector<1x2x128xf32>,
    %cst_24 = arith.constant dense<0xFF800000> : vector<2xf32>
    %34 = vector.multi_reduction <maximumf>, %16, %cst_24 [1] : vector<2x128xf32> to vector<2xf32>
    %35 = vector.shape_cast %34 : vector<2xf32> to vector<2x1xf32>
    %36 = vector.broadcast %35 : vector<2x1xf32> to vector<2x128xf32>
    %37 = arith.subf %16, %36 : vector<2x128xf32>
    %38 = math.exp %37 : vector<2x128xf32>
    %cst_25 = arith.constant dense<0.000000e+00> : vector<2xf32>
    %39 = vector.multi_reduction <add>, %38, %cst_25 [1] : vector<2x128xf32> to vector<2xf32>
    %40 = vector.shape_cast %39 : vector<2xf32> to vector<2x1xf32>
    %41 = math.log %40 : vector<2x1xf32>
    %42 = arith.addf %35, %41 : vector<2x1xf32>
    %c0_26 = arith.constant 0 : index
    %c0_27 = arith.constant 0 : index
    %c0_28 = arith.constant 0 : index
    %43 = vector.load %arg6[%c0_26, %c0_27, %c0_28] : memref<1x2x128xf32, #tpu.memory_space<vmem>>, vector<1x2x128xf32>
    %44 = vector.shape_cast %43 : vector<1x2x128xf32> to vector<2x128xf32>
    %45 = vector.broadcast %42 : vector<2x1xf32> to vector<2x128xf32>
    %46 = arith.subf %16, %45 : vector<2x128xf32>
    %47 = arith.mulf %44, %46 : vector<2x128xf32>
    %48 = vector.shape_cast %47 : vector<2x128xf32> to vector<1x2x128xf32>
    %cst_29 = arith.constant dense<0.000000e+00> : vector<1xf32>
    %49 = vector.multi_reduction <add>, %48, %cst_29 [1, 2] : vector<1x2x128xf32> to vector<1xf32>
    %50 = vector.shape_cast %49 : vector<1xf32> to vector<1x1x1xf32>
    %51 = vector.extract %50[0, 0, 0] : f32 from vector<1x1x1xf32>
    %cst_30 = arith.constant 0.000000e+00 : f32
    %52 = arith.subf %cst_30, %51 : f32
    %53 = vector.broadcast %52 : f32 to vector<1x128xf32>
    %c0_31 = arith.constant 0 : index
    %c0_32 = arith.constant 0 : index
    %c0_33 = arith.constant 0 : index
    %54 = vector.load %arg9[%c0_31, %c0_32, %c0_33] : memref<1x1x128xf32, #tpu.memory_space<vmem>>, vector<1x1x128xf32>
    %55 = vector.shape_cast %54 : vector<1x1x128xf32> to vector<1x128xf32>
    %56 = vector.shape_cast %53 : vector<1x128xf32> to vector<1x1x128xf32>
    tpu.vector_store %arg9[%c0_31, %c0_32, %c0_33], %56 {strides = array<i32>} : memref<1x1x128xf32, #tpu.memory_space<vmem>>, vector<1x1x128xf32>,
    return
  }
  func.func @transform_0(%arg0: i32) -> (i32, i32, i32) {
    %c0_i32 = arith.constant 0 : i32
    %c0_i32_0 = arith.constant 0 : i32
    %c0_i32_1 = arith.constant 0 : i32
    return %arg0, %c0_i32, %c0_i32_0 : i32, i32, i32
  }
  func.func @transform_1(%arg0: i32) -> (i32, i32, i32) {
    %c0_i32 = arith.constant 0 : i32
    %c0_i32_0 = arith.constant 0 : i32
    %c0_i32_1 = arith.constant 0 : i32
    return %arg0, %c0_i32, %c0_i32_0 : i32, i32, i32
  }
  func.func @transform_2(%arg0: i32) -> (i32, i32) {
    %c0_i32 = arith.constant 0 : i32
    %c0_i32_0 = arith.constant 0 : i32
    %c0_i32_1 = arith.constant 0 : i32
    return %c0_i32, %c0_i32_0 : i32, i32
  }
  func.func @transform_3(%arg0: i32) -> (i32, i32) {
    %c0_i32 = arith.constant 0 : i32
    %c0_i32_0 = arith.constant 0 : i32
    %c0_i32_1 = arith.constant 0 : i32
    return %c0_i32, %c0_i32_0 : i32, i32
  }
  func.func @transform_4(%arg0: i32) -> (i32, i32) {
    %c0_i32 = arith.constant 0 : i32
    %c0_i32_0 = arith.constant 0 : i32
    %c0_i32_1 = arith.constant 0 : i32
    return %c0_i32, %c0_i32_0 : i32, i32
  }
  func.func @transform_5(%arg0: i32) -> (i32, i32, i32) {
    %c0_i32 = arith.constant 0 : i32
    %c0_i32_0 = arith.constant 0 : i32
    %c0_i32_1 = arith.constant 0 : i32
    return %arg0, %c0_i32, %c0_i32_0 : i32, i32, i32
  }
  func.func @transform_6(%arg0: i32) -> (i32, i32, i32) {
    %c0_i32 = arith.constant 0 : i32
    %c0_i32_0 = arith.constant 0 : i32
    %c0_i32_1 = arith.constant 0 : i32
    return %arg0, %c0_i32, %c0_i32_0 : i32, i32, i32
  }
  func.func @transform_7(%arg0: i32) -> (i32, i32, i32) {
    %c0_i32 = arith.constant 0 : i32
    %c0_i32_0 = arith.constant 0 : i32
    %c0_i32_1 = arith.constant 0 : i32
    return %arg0, %c0_i32, %c0_i32_0 : i32, i32, i32
  }
  func.func @transform_8(%arg0: i32) -> (i32, i32, i32) {
    %c0_i32 = arith.constant 0 : i32
    %c0_i32_0 = arith.constant 0 : i32
    %c0_i32_1 = arith.constant 0 : i32
    return %arg0, %c0_i32, %c0_i32_0 : i32, i32, i32
  }
}

</mosaic_0001>

<llo_original>
// kernel: bert_relation_forward.12
$region0: #{bert_relation_forward.12}
  #allocation0 [shape = 'u32[]', space=smem, size = 0x4, offset = 0x4, fixed_abs, tag = 'smem constant byte address 0x4 - core index']
  #allocation1 [shape = 'u32[144,128]{1,0:T(1,128)}', space=vmem, size = 0x12000, scoped, tag = 'internal scratch']
  %s0 = inlined_call_operand.vmem [shape: bf16[16,32], index: 0, kind: input, shape index: {}]
  %s1 = inlined_call_operand.vmem [shape: f32[1,32], index: 1, kind: input, shape index: {}]
  %s2 = inlined_call_operand.vmem [shape: f32[1,32], index: 2, kind: input, shape index: {}]
  %s3 = inlined_call_operand.vmem [shape: bf16[16,32], index: 3, kind: output, shape index: {}]
  %s4 = sld [smem:[#allocation0]]
  $region22: #{bert_relation_forward.12} parent=0
    _
  %s6 = ssub.s32 1, %s4
  %s7 = scalar_select 0, %s6, %s4
  // Predicated region
  $region2: #{bert_relation_forward.12} parent=0 // pred_check
    _
  $region3: #{bert_relation_forward.12} parent=0 // pred_check_branch
    %9 = sbr.rel (0) target = $region5
  $region4: #{bert_relation_forward.12} parent=0 // pred_region
    _
  $region5: #{bert_relation_forward.12} parent=0 // pred_fallthru
    _
  // Predicated region
  $region6: #{bert_relation_forward.12} parent=0 // pred_check
    _
  $region7: #{bert_relation_forward.12} parent=0 // pred_check_branch
    %11 = sbr.rel (0) target = $region9
  $region8: #{bert_relation_forward.12} parent=0 // pred_region
    _
  $region9: #{bert_relation_forward.12} parent=0 // pred_fallthru
    _
  // Predicated region
  $region10: #{bert_relation_forward.12} parent=0 // pred_check
    _
  $region11: #{bert_relation_forward.12} parent=0 // pred_check_branch
    %13 = sbr.rel (0) target = $region13
  $region12: #{bert_relation_forward.12} parent=0 // pred_region
    _
  $region13: #{bert_relation_forward.12} parent=0 // pred_fallthru
    _
  %v14 = vld [vmem:[%s0] sm:$0xf]
  %v15 = vld [vmem:[%s0 + $0x4] sm:$0xf]
  %v16 = vunpack.c.l.bf16 %v14
  %v17 = vunpack.c.l.bf16 %v15
  %vm18 = vcmask 261120
  %v19 = vsel %vm18, %v16, 0.0
  %20 = vadd.xlane.f32.xlu0 %v19
  %v21 = vpop.xlane.xlu0 %20
  %v22 = vsel %vm18, %v17, 0.0
  %23 = vadd.xlane.f32.xlu0 %v22
  %v24 = vpop.xlane.xlu0 %23
  %v25 = vrcp.pop 32.0
  %v26 = vmul.f32 %v21, %v25
  %v27 = vmul.f32 %v24, %v25
  %v28 = vsub.f32 %v16, %v26
  %v29 = vsub.f32 %v17, %v27
  %v30 = vmul.f32 %v28, %v28
  %v31 = vmul.f32 %v29, %v29
  %v32 = vsel %vm18, %v30, 0.0
  %33 = vadd.xlane.f32.xlu0 %v32
  %v34 = vpop.xlane.xlu0 %33
  %v35 = vsel %vm18, %v31, 0.0
  %36 = vadd.xlane.f32.xlu0 %v35
  %v37 = vpop.xlane.xlu0 %36
  %v38 = vmul.f32 %v34, %v25
  %v39 = vmul.f32 %v37, %v25
  %v40 = vadd.f32 %v38, 1e-12
  %v41 = vadd.f32 %v39, 1e-12
  %v42 = vrsqrt.pop %v40
  %v43 = vrsqrt.pop %v41
  %v44 = vmul.f32 %v28, %v42
  %v45 = vmul.f32 %v29, %v43
  %v46 = vld [vmem:[%s1] sm:$0x1]
  %v48 = vlaneseq
  %v49 = vshrl.u32 %v48, 7
  %v50 = vsub.s32 0, %v49
  %v51 = vrot.slane %v46, %v50
  %v53 = vmul.f32 %v44, %v51
  %v54 = vmul.f32 %v45, %v51
  %v55 = vld [vmem:[%s2] sm:$0x1]
  %v57 = vlaneseq
  %v58 = vshrl.u32 %v57, 7
  %v59 = vsub.s32 0, %v58
  %v60 = vrot.slane %v55, %v59
  %v62 = vadd.f32 %v53, %v60
  %v63 = vadd.f32 %v54, %v60
  %v64 = vpack.c.bf16 %v63, %v62
  %v66 = vunpack.c.l.b16 %v64
  %v67 = vunpack.c.h.b16 %v64
  %v68 = vpack.c.b16 %v66, %v66
  %v69 = vpack.c.b16 %v67, %v67
  %vm72 = vcmask 257024
  %73 = vst.msk [vmem:[%s3] sm:$0xf] %vm72, %v68
  %74 = vst.msk [vmem:[%s3 + $0x4] sm:$0xf] %vm72, %v69
  // Predicated region
  $region14: #{bert_relation_forward.12} parent=0 // pred_check
    _
  $region15: #{bert_relation_forward.12} parent=0 // pred_check_branch
    %76 = sbr.rel (0) target = $region17
  $region16: #{bert_relation_forward.12} parent=0 // pred_region
    _
  $region17: #{bert_relation_forward.12} parent=0 // pred_fallthru
    _
  // Predicated region
  $region18: #{bert_relation_forward.12} parent=0 // pred_check
    _
  $region19: #{bert_relation_forward.12} parent=0 // pred_check_branch
    %78 = sbr.rel (0) target = $region21
  $region20: #{bert_relation_forward.12} parent=0 // pred_region
    _
  $region21: #{bert_relation_forward.12} parent=0 // pred_fallthru
    _

// kernel: bert_relation_forward.13
$region0: #{bert_relation_forward.13}
  #allocation0 [shape = 'u32[]', space=smem, size = 0x4, offset = 0x4, fixed_abs, tag = 'smem constant byte address 0x4 - core index']
  #allocation1 [shape = 'u32[144,128]{1,0:T(1,128)}', space=vmem, size = 0x12000, scoped, tag = 'internal scratch']
  %s0 = inlined_call_operand.vmem [shape: bf16[16,32], index: 0, kind: input, shape index: {}]
  %s1 = inlined_call_operand.vmem [shape: bf16[32,96], index: 1, kind: input, shape index: {}]
  %s2 = inlined_call_operand.vmem [shape: f32[1,96], index: 2, kind: input, shape index: {}]
  %s3 = inlined_call_operand.vmem [shape: bf16[16,96], index: 3, kind: output, shape index: {}]
  %s4 = sld [smem:[#allocation0]]
  $region22: #{bert_relation_forward.13} parent=0
    _
  %s6 = ssub.s32 1, %s4
  %s7 = scalar_select 0, %s6, %s4
  // Predicated region
  $region2: #{bert_relation_forward.13} parent=0 // pred_check
    _
  $region3: #{bert_relation_forward.13} parent=0 // pred_check_branch
    %9 = sbr.rel (0) target = $region5
  $region4: #{bert_relation_forward.13} parent=0 // pred_region
    _
  $region5: #{bert_relation_forward.13} parent=0 // pred_fallthru
    _
  // Predicated region
  $region6: #{bert_relation_forward.13} parent=0 // pred_check
    _
  $region7: #{bert_relation_forward.13} parent=0 // pred_check_branch
    %11 = sbr.rel (0) target = $region9
  $region8: #{bert_relation_forward.13} parent=0 // pred_region
    _
  $region9: #{bert_relation_forward.13} parent=0 // pred_fallthru
    _
  // Predicated region
  $region10: #{bert_relation_forward.13} parent=0 // pred_check
    _
  $region11: #{bert_relation_forward.13} parent=0 // pred_check_branch
    %13 = sbr.rel (0) target = $region13
  $region12: #{bert_relation_forward.13} parent=0 // pred_region
    _
  $region13: #{bert_relation_forward.13} parent=0 // pred_fallthru
    _
  %v15 = vld [vmem:[%s0] sm:$0xf]
  %v16 = vld [vmem:[%s0 + $0x4] sm:$0xf]
  %v17 = vld [vmem:[%s1] sm:$0xf]
  %v18 = vld [vmem:[%s1 + $0x4] sm:$0xf]
  %v19 = vld [vmem:[%s1 + $0x8] sm:$0xf]
  %v20 = vld [vmem:[%s1 + $0xc] sm:$0xf]
  %v21 = vld [vmem:[%s2] sm:$0x1]
  %v23 = vlaneseq
  %v24 = vshrl.u32 %v23, 7
  %v25 = vsub.s32 0, %v24
  %v26 = vrot.slane %v21, %v25
  %v30 = vunpack.c.l.b16 %v15
  %v31 = vunpack.c.l.b16 %v16
  %v32 = vpack.c.b16 %v31, %v30
  %v37 = vunpack.c.l.b16 %v17
  %v38 = vunpack.c.l.b16 %v18
  %v39 = vunpack.c.l.b16 %v19
  %v40 = vunpack.c.l.b16 %v20
  %v41 = vpack.c.b16 %v38, %v37
  %v42 = vpack.c.b16 %v40, %v39
  %vm45 = vcmask 261120
  %v47 = vsel %vm45, %v32, 0
  %49 = vmatprep.subr.bf16.mxu0 0
  %50 = vmatpush1.bf16.msra.mxu0 0
  %51 = vmatprep.subr.bf16.mxu0 0
  %52 = vmatpush1.bf16.msra.mxu0 0
  %53 = vmatprep.subr.bf16.mxu0 0
  %54 = vmatpush1.bf16.msra.mxu0 0
  %55 = vmatprep.subr.bf16.mxu0 0
  %56 = vmatpush1.bf16.msra.mxu0 0
  %57 = vmatprep.subr.bf16.mxu0 0
  %58 = vmatpush1.bf16.msra.mxu0 0
  %59 = vmatprep.subr.bf16.mxu0 0
  %60 = vmatpush1.bf16.msra.mxu0 0
  %61 = vmatprep.subr.bf16.mxu0 0
  %62 = vmatpush1.bf16.msra.mxu0 %v42
  %63 = vmatprep.subr.bf16.mxu0 0
  %64 = vmatpush1.bf16.msra.mxu0 %v41
  %65 = vmatprep.subr.bf16.mxu0 0
  %66 = vmatpush2.bf16.msra.mxu0 0
  %67 = vmatprep.subr.bf16.mxu0 0
  %68 = vmatpush2.bf16.msra.mxu0 0
  %69 = vmatprep.subr.bf16.mxu0 0
  %70 = vmatpush2.bf16.msra.mxu0 0
  %71 = vmatprep.subr.bf16.mxu0 0
  %72 = vmatpush2.bf16.msra.mxu0 0
  %73 = vmatprep.subr.bf16.mxu0 0
  %74 = vmatpush2.bf16.msra.mxu0 0
  %75 = vmatprep.subr.bf16.mxu0 0
  %76 = vmatpush2.bf16.msra.mxu0 0
  %77 = vmatprep.subr.bf16.mxu0 0
  %78 = vmatpush2.bf16.msra.mxu0 0
  %79 = vmatprep.subr.bf16.mxu0 0
  %80 = vmatpush2.bf16.msra.mxu0 0
  %81 = vmatprep.mubr.bf16.mxu0 0
  %82 = vmatmul.mubr.bf16.gmra.mxu0 %v47
  %v83 = vpop.f32.mrf.mxu0
  %v84 = vadd.f32 %v26, %v83
  %v85 = vpop.f32.mrf.mxu0
  %v86 = vpop.f32.mrf.mxu0
  %v87 = vadd.f32 %v26, %v86
  %v88 = vpop.f32.mrf.mxu0
  %89 = vdwg.mxu0
  %v90 = vpack.c.bf16 %v87, %v84
  %v92 = vunpack.c.l.b16 %v90
  %v93 = vunpack.c.h.b16 %v90
  %v94 = vpack.c.b16 %v92, %v92
  %v95 = vpack.c.b16 %v93, %v93
  %vm98 = vcmask 781312
  %99 = vst.msk [vmem:[%s3] sm:$0xf] %vm98, %v94
  %100 = vst.msk [vmem:[%s3 + $0x4] sm:$0xf] %vm98, %v95
  // Predicated region
  $region14: #{bert_relation_forward.13} parent=0 // pred_check
    _
  $region15: #{bert_relation_forward.13} parent=0 // pred_check_branch
    %102 = sbr.rel (0) target = $region17
  $region16: #{bert_relation_forward.13} parent=0 // pred_region
    _
  $region17: #{bert_relation_forward.13} parent=0 // pred_fallthru
    _
  // Predicated region
  $region18: #{bert_relation_forward.13} parent=0 // pred_check
    _
  $region19: #{bert_relation_forward.13} parent=0 // pred_check_branch
    %104 = sbr.rel (0) target = $region21
  $region20: #{bert_relation_forward.13} parent=0 // pred_region
    _
  $region21: #{bert_relation_forward.13} parent=0 // pred_fallthru
    _

// kernel: bert_relation_forward.14
$region0: #{bert_relation_forward.14}
  #allocation0 [shape = 'u32[]', space=smem, size = 0x4, offset = 0x4, fixed_abs, tag = 'smem constant byte address 0x4 - core index']
  #allocation1 [shape = 'u32[144,128]{1,0:T(1,128)}', space=vmem, size = 0x12000, scoped, tag = 'internal scratch']
  %s0 = inlined_call_operand.vmem [shape: bf16[2,4,8,8], index: 0, kind: input, shape index: {}]
  %s1 = inlined_call_operand.vmem [shape: bf16[2,4,8,8], index: 1, kind: input, shape index: {}]
  %s2 = inlined_call_operand.vmem [shape: bf16[2,4,8,8], index: 2, kind: input, shape index: {}]
  %s3 = inlined_call_operand.vmem [shape: f32[2,1,8], index: 3, kind: input, shape index: {}]
  %s4 = inlined_call_operand.vmem [shape: bf16[2,4,8,8], index: 4, kind: output, shape index: {}]
  %s5 = sld [smem:[#allocation0]]
  $region49: #{bert_relation_forward.14} parent=0
    _
  %s7 = ssub.s32 1, %s5
  %s8 = scalar_select 0, %s7, %s5
  loop: start=0, step=1, limit=6
  $region2: #{bert_relation_forward.14} parent=0 // loop_pre_header
    _
  $region3: #{bert_relation_forward.14} parent=0 // loop_header
    %s10 = sphi 0, %s14
    %p11 = scmp.ge.s32.totalorder %s10, 6
    %s17 = sphi 0, %s29
    %s18 = sphi 0, %s25
    %s19 = sphi 0, %s17
    %s20 = sphi 0, %s18
    %s21 = sphi 0, %s19
    %s22 = sphi 0, %s20
    %s34 = sphi 0, %s36
    %s37 = sphi 0, %s34
    %s38 = sphi 0, %s37
    %s54 = sphi 0, %s38
    %s62 = sphi 0, %s64
    %s65 = sphi 0, %s62
    %s66 = sphi 0, %s65
    %s82 = sphi 0, %s66
    %s90 = sphi 0, %s92
    %s93 = sphi 0, %s90
    %s94 = sphi 0, %s93
    %s110 = sphi 0, %s94
    %s116 = sphi 0, %s118
    %s119 = sphi 0, %s116
    %s120 = sphi 0, %s119
    %s136 = sphi 0, %s120
    %s144 = sphi 0, %s146
    %s147 = sphi 0, %s144
    %s148 = sphi 0, %s147
    %s164 = sphi 0, %s148
  $region4: #{bert_relation_forward.14} parent=0 // loop_header_branch
    %13 = sbr.rel (%p11) target = $region8
  $region5: #{bert_relation_forward.14} parent=0 // loop_body
    %s15 = ssub.s32 %s10, 1
    %s16 = ssub.s32 %s10, 2
    %s23 = sadd.s32 1, %s18
    %p24 = scmp.ge.s32.totalorder %s23, 2
    %s25 = scalar_select %p24, 0, %s23
    %s26 = sadd.s32 1, %s17
    %s27 = scalar_select %p24, %s26, %s17
    %p28 = scmp.ge.s32.totalorder %s27, 2
    %s29 = scalar_select %p28, 0, %s27
    %s30 = ssub.s32 %s17, %s29
    %s31 = ssub.s32 %s18, %s25
    %s32 = sor.u32 %s30, %s31
    %p33 = scmp.eq.s32.totalorder %s32, 0
    %s35 = sadd.s32 %s34, 1
    %s36 = scalar_select %p33, %s34, %s35
    %p39 = pneg %p33
    %p40 = scmp.eq.s32.totalorder %s10, 3
    %p41 = por %p39, %p40
    %p42 = scmp.ne.s32.totalorder %s34, %s37
    %p43 = scmp.eq.s32.totalorder %s10, 0
    %p44 = por %p42, %p43
    %p45 = scmp.ne.s32.totalorder %s34, %s37
    %p46 = scmp.eq.s32.totalorder %s15, 3
    %p47 = por %p45, %p46
    %p48 = scmp.ne.s32.totalorder %s37, %s38
    %p49 = scmp.eq.s32.totalorder %s15, 0
    %p50 = por %p48, %p49
    %p51 = scmp.ne.s32.totalorder %s37, %s38
    %p52 = scmp.eq.s32.totalorder %s16, 3
    %p53 = por %p51, %p52
    %p55 = scmp.ne.s32.totalorder %s38, %s54
    %p56 = scmp.eq.s32.totalorder %s16, 0
    %p57 = por %p55, %p56
    %s58 = ssub.s32 %s17, %s29
    %s59 = ssub.s32 %s18, %s25
    %s60 = sor.u32 %s58, %s59
    %p61 = scmp.eq.s32.totalorder %s60, 0
    %s63 = sadd.s32 %s62, 1
    %s64 = scalar_select %p61, %s62, %s63
    %p67 = pneg %p61
    %p68 = scmp.eq.s32.totalorder %s10, 3
    %p69 = por %p67, %p68
    %p70 = scmp.ne.s32.totalorder %s62, %s65
    %p71 = scmp.eq.s32.totalorder %s10, 0
    %p72 = por %p70, %p71
    %p73 = scmp.ne.s32.totalorder %s62, %s65
    %p74 = scmp.eq.s32.totalorder %s15, 3
    %p75 = por %p73, %p74
    %p76 = scmp.ne.s32.totalorder %s65, %s66
    %p77 = scmp.eq.s32.totalorder %s15, 0
    %p78 = por %p76, %p77
    %p79 = scmp.ne.s32.totalorder %s65, %s66
    %p80 = scmp.eq.s32.totalorder %s16, 3
    %p81 = por %p79, %p80
    %p83 = scmp.ne.s32.totalorder %s66, %s82
    %p84 = scmp.eq.s32.totalorder %s16, 0
    %p85 = por %p83, %p84
    %s86 = ssub.s32 %s17, %s29
    %s87 = ssub.s32 %s18, %s25
    %s88 = sor.u32 %s86, %s87
    %p89 = scmp.eq.s32.totalorder %s88, 0
    %s91 = sadd.s32 %s90, 1
    %s92 = scalar_select %p89, %s90, %s91
    %p95 = pneg %p89
    %p96 = scmp.eq.s32.totalorder %s10, 3
    %p97 = por %p95, %p96
    %p98 = scmp.ne.s32.totalorder %s90, %s93
    %p99 = scmp.eq.s32.totalorder %s10, 0
    %p100 = por %p98, %p99
    %p101 = scmp.ne.s32.totalorder %s90, %s93
    %p102 = scmp.eq.s32.totalorder %s15, 3
    %p103 = por %p101, %p102
    %p104 = scmp.ne.s32.totalorder %s93, %s94
    %p105 = scmp.eq.s32.totalorder %s15, 0
    %p106 = por %p104, %p105
    %p107 = scmp.ne.s32.totalorder %s93, %s94
    %p108 = scmp.eq.s32.totalorder %s16, 3
    %p109 = por %p107, %p108
    %p111 = scmp.ne.s32.totalorder %s94, %s110
    %p112 = scmp.eq.s32.totalorder %s16, 0
    %p113 = por %p111, %p112
    %s114 = ssub.s32 %s17, %s29
    %p115 = scmp.eq.s32.totalorder %s114, 0
    %s117 = sadd.s32 %s116, 1
    %s118 = scalar_select %p115, %s116, %s117
    %p121 = pneg %p115
    %p122 = scmp.eq.s32.totalorder %s10, 3
    %p123 = por %p121, %p122
    %p124 = scmp.ne.s32.totalorder %s116, %s119
    %p125 = scmp.eq.s32.totalorder %s10, 0
    %p126 = por %p124, %p125
    %p127 = scmp.ne.s32.totalorder %s116, %s119
    %p128 = scmp.eq.s32.totalorder %s15, 3
    %p129 = por %p127, %p128
    %p130 = scmp.ne.s32.totalorder %s119, %s120
    %p131 = scmp.eq.s32.totalorder %s15, 0
    %p132 = por %p130, %p131
    %p133 = scmp.ne.s32.totalorder %s119, %s120
    %p134 = scmp.eq.s32.totalorder %s16, 3
    %p135 = por %p133, %p134
    %p137 = scmp.ne.s32.totalorder %s120, %s136
    %p138 = scmp.eq.s32.totalorder %s16, 0
    %p139 = por %p137, %p138
    %s140 = ssub.s32 %s17, %s29
    %s141 = ssub.s32 %s18, %s25
    %s142 = sor.u32 %s140, %s141
    %p143 = scmp.eq.s32.totalorder %s142, 0
    %s145 = sadd.s32 %s144, 1
    %s146 = scalar_select %p143, %s144, %s145
    %p149 = pneg %p143
    %p150 = scmp.eq.s32.totalorder %s10, 3
    %p151 = por %p149, %p150
    %p152 = scmp.ne.s32.totalorder %s144, %s147
    %p153 = scmp.eq.s32.totalorder %s10, 0
    %p154 = por %p152, %p153
    %p155 = scmp.ne.s32.totalorder %s144, %s147
    %p156 = scmp.eq.s32.totalorder %s15, 3
    %p157 = por %p155, %p156
    %p158 = scmp.ne.s32.totalorder %s147, %s148
    %p159 = scmp.eq.s32.totalorder %s15, 0
    %p160 = por %p158, %p159
    %p161 = scmp.ne.s32.totalorder %s147, %s148
    %p162 = scmp.eq.s32.totalorder %s16, 3
    %p163 = por %p161, %p162
    %p165 = scmp.ne.s32.totalorder %s148, %s164
    %p166 = scmp.eq.s32.totalorder %s16, 0
    %p167 = por %p165, %p166
    %p168 = scmp.le.s32.totalorder 1, %s10
    %p169 = scmp.lt.s32.totalorder %s10, 5
    %p170 = pnand %p168, %p169
    %p171 = pneg %p170
    // Predicated region
    $region9: #{bert_relation_forward.14} parent=5 // pred_check
      _
    $region10: #{bert_relation_forward.14} parent=5 // pred_check_branch
      %173 = sbr.rel (%p170) target = $region12
    $region11: #{bert_relation_forward.14} parent=5 // pred_region
      %s174 = ssub.s32 %s10, 1
    $region12: #{bert_relation_forward.14} parent=5 // pred_fallthru
      _
    %p175 = scmp.lt.s32.totalorder %s10, 4
    // Predicated region
    $region13: #{bert_relation_forward.14} parent=5 // pred_check
      %p176 = pneg %p175
    $region14: #{bert_relation_forward.14} parent=5 // pred_check_branch
      %178 = sbr.rel (%p176) target = $region16
    $region15: #{bert_relation_forward.14} parent=5 // pred_region
      // Predicated region
      $region17: #{bert_relation_forward.14} parent=15 // pred_check
        %p179 = pneg %p44
      $region18: #{bert_relation_forward.14} parent=15 // pred_check_branch
        %181 = sbr.rel (%p179) target = $region20
      $region19: #{bert_relation_forward.14} parent=15 // pred_region
        %s182 = smul.u32 2, %s18
        %p183 = scmp.lt.s32.totalorder %s17, 1
        %s184 = scalar_select %p183, %s17, 1
        %p185 = scmp.lt.s32.totalorder %s182, 3
        %s186 = scalar_select %p185, %s182, 3
        %s187 = smul.addr %s184, 4
        %s188 = sadd.s32 %s186, %s187
        %s189 = smul.addr %s188, 4
        %s190 = scalar_lea.vmem %s0, %s189
        %s191 = smul.u32 2, %s18
      $region20: #{bert_relation_forward.14} parent=15 // pred_fallthru
        _
      // Predicated region
      $region21: #{bert_relation_forward.14} parent=15 // pred_check
        %p192 = pneg %p72
      $region22: #{bert_relation_forward.14} parent=15 // pred_check_branch
        %194 = sbr.rel (%p192) target = $region24
      $region23: #{bert_relation_forward.14} parent=15 // pred_region
        %s195 = smul.u32 2, %s18
        %p196 = scmp.lt.s32.totalorder %s17, 1
        %s197 = scalar_select %p196, %s17, 1
        %p198 = scmp.lt.s32.totalorder %s195, 3
        %s199 = scalar_select %p198, %s195, 3
        %s200 = smul.addr %s197, 4
        %s201 = sadd.s32 %s199, %s200
        %s202 = smul.addr %s201, 4
        %s203 = scalar_lea.vmem %s1, %s202
        %s204 = smul.u32 2, %s18
      $region24: #{bert_relation_forward.14} parent=15 // pred_fallthru
        _
      // Predicated region
      $region25: #{bert_relation_forward.14} parent=15 // pred_check
        %p205 = pneg %p100
      $region26: #{bert_relation_forward.14} parent=15 // pred_check_branch
        %207 = sbr.rel (%p205) target = $region28
      $region27: #{bert_relation_forward.14} parent=15 // pred_region
        %s208 = smul.u32 2, %s18
        %p209 = scmp.lt.s32.totalorder %s17, 1
        %s210 = scalar_select %p209, %s17, 1
        %p211 = scmp.lt.s32.totalorder %s208, 3
        %s212 = scalar_select %p211, %s208, 3
        %s213 = smul.addr %s210, 4
        %s214 = sadd.s32 %s212, %s213
        %s215 = smul.addr %s214, 4
        %s216 = scalar_lea.vmem %s2, %s215
        %s217 = smul.u32 2, %s18
      $region28: #{bert_relation_forward.14} parent=15 // pred_fallthru
        _
      // Predicated region
      $region29: #{bert_relation_forward.14} parent=15 // pred_check
        %p218 = pneg %p126
      $region30: #{bert_relation_forward.14} parent=15 // pred_check_branch
        %220 = sbr.rel (%p218) target = $region32
      $region31: #{bert_relation_forward.14} parent=15 // pred_region
        %p221 = scmp.lt.s32.totalorder %s17, 1
        %s222 = scalar_select %p221, %s17, 1
        %s223 = scalar_lea.vmem %s3, %s222
      $region32: #{bert_relation_forward.14} parent=15 // pred_fallthru
        _
    $region16: #{bert_relation_forward.14} parent=5 // pred_fallthru
      _
    %p224 = scmp.le.s32.totalorder 1, %s10
    %p225 = scmp.lt.s32.totalorder %s10, 5
    %p226 = pnand %p224, %p225
    %p227 = pneg %p226
    // Predicated region
    $region33: #{bert_relation_forward.14} parent=5 // pred_check
      _
    $region34: #{bert_relation_forward.14} parent=5 // pred_check_branch
      %229 = sbr.rel (%p226) target = $region36
    $region35: #{bert_relation_forward.14} parent=5 // pred_region
      %s230 = ssub.s32 %s10, 1
      %s231 = smul.u32 2, %s20
      %p232 = scmp.lt.s32.totalorder %s19, 1
      %s233 = scalar_select %p232, %s19, 1
      %p234 = scmp.lt.s32.totalorder %s231, 3
      %s235 = scalar_select %p234, %s231, 3
      %s236 = smul.addr %s233, 4
      %s237 = sadd.s32 %s235, %s236
      %s238 = smul.addr %s237, 4
      %s239 = scalar_lea.vmem %s0, %s238
      %p240 = pneg %p50
      %p241 = pneg %p47
      %s242 = smul.u32 2, %s20
      %p243 = scmp.lt.s32.totalorder %s19, 1
      %s244 = scalar_select %p243, %s19, 1
      %p245 = scmp.lt.s32.totalorder %s242, 3
      %s246 = scalar_select %p245, %s242, 3
      %s247 = smul.addr %s244, 4
      %s248 = sadd.s32 %s246, %s247
      %s249 = smul.addr %s248, 4
      %s250 = scalar_lea.vmem %s1, %s249
      %p251 = pneg %p78
      %p252 = pneg %p75
      %s253 = smul.u32 2, %s20
      %p254 = scmp.lt.s32.totalorder %s19, 1
      %s255 = scalar_select %p254, %s19, 1
      %p256 = scmp.lt.s32.totalorder %s253, 3
      %s257 = scalar_select %p256, %s253, 3
      %s258 = smul.addr %s255, 4
      %s259 = sadd.s32 %s257, %s258
      %s260 = smul.addr %s259, 4
      %s261 = scalar_lea.vmem %s2, %s260
      %p262 = pneg %p106
      %p263 = pneg %p103
      %p264 = scmp.lt.s32.totalorder %s19, 1
      %s265 = scalar_select %p264, %s19, 1
      %s266 = scalar_lea.vmem %s3, %s265
      %p267 = pneg %p132
      %p268 = pneg %p129
      %p269 = pneg %p160
      %p270 = pneg %p157
      %s271 = smul.u32 2, %s20
      %p272 = scmp.lt.s32.totalorder %s19, 1
      %s273 = scalar_select %p272, %s19, 1
      %p274 = scmp.lt.s32.totalorder %s271, 3
      %s275 = scalar_select %p274, %s271, 3
      %s276 = smul.addr %s273, 4
      %s277 = sadd.s32 %s275, %s276
      %s278 = smul.addr %s277, 4
      %s279 = scalar_lea.vmem %s4, %s278
      %s280 = smul.u32 2, %s20
      %p281 = scmp.lt.s32.totalorder %s19, 1
      %s282 = scalar_select %p281, %s19, 1
      %p283 = scmp.lt.s32.totalorder %s280, 3
      %s284 = scalar_select %p283, %s280, 3
      %s285 = smul.addr %s282, 4
      %s286 = sadd.s32 %s284, %s285
      %s287 = smul.addr %s286, 4
      %s288 = scalar_lea.vmem %s0, %s287
      %s289 = smul.u32 2, %s20
      %s290 = smul.u32 2, %s20
      %p291 = scmp.lt.s32.totalorder %s19, 1
      %s292 = scalar_select %p291, %s19, 1
      %p293 = scmp.lt.s32.totalorder %s290, 3
      %s294 = scalar_select %p293, %s290, 3
      %s295 = smul.addr %s292, 4
      %s296 = sadd.s32 %s294, %s295
      %s297 = smul.addr %s296, 4
      %s298 = scalar_lea.vmem %s1, %s297
      %s299 = smul.u32 2, %s20
      %s300 = smul.u32 2, %s20
      %p301 = scmp.lt.s32.totalorder %s19, 1
      %s302 = scalar_select %p301, %s19, 1
      %p303 = scmp.lt.s32.totalorder %s300, 3
      %s304 = scalar_select %p303, %s300, 3
      %s305 = smul.addr %s302, 4
      %s306 = sadd.s32 %s304, %s305
      %s307 = smul.addr %s306, 4
      %s308 = scalar_lea.vmem %s2, %s307
      %s309 = smul.u32 2, %s20
      %p310 = scmp.lt.s32.totalorder %s19, 1
      %s311 = scalar_select %p310, %s19, 1
      %s312 = scalar_lea.vmem %s3, %s311
      %s313 = smul.u32 2, %s20
      %p314 = scmp.lt.s32.totalorder %s19, 1
      %s315 = scalar_select %p314, %s19, 1
      %p316 = scmp.lt.s32.totalorder %s313, 3
      %s317 = scalar_select %p316, %s313, 3
      %s318 = smul.addr %s315, 4
      %s319 = sadd.s32 %s317, %s318
      %s320 = smul.addr %s319, 4
      %s321 = scalar_lea.vmem %s4, %s320
      %s322 = smul.u32 2, %s20
      %v324 = vld [vmem:[%s288] sm:$0xf]
      %v325 = vld [vmem:[%s288 + $0x4] sm:$0xf]
      %v326 = vld [vmem:[%s298] sm:$0xf]
      %v327 = vld [vmem:[%s298 + $0x4] sm:$0xf]
      %v328 = vld [vmem:[%s308] sm:$0xf]
      %v329 = vld [vmem:[%s308 + $0x4] sm:$0xf]
      %v330 = vld [vmem:[%s312] sm:$0x1]
      %v332 = vlaneseq
      %v333 = vshrl.u32 %v332, 7
      %v334 = vsub.s32 0, %v333
      %v335 = vrot.slane %v330, %v334
      %vm337 = vcmask 64512
      %v339 = vsel %vm337, %v324, 0
      %v342 = vsel %vm337, %v326, 0
      %344 = vmatprep.subr.bf16.mxu0 0
      %345 = vmatpush1.bf16.xpose.msra.mxu0 0
      %346 = vmatprep.subr.bf16.mxu0 0
      %347 = vmatpush1.bf16.xpose.msra.mxu0 0
      %348 = vmatprep.subr.bf16.mxu0 0
      %349 = vmatpush1.bf16.xpose.msra.mxu0 0
      %350 = vmatprep.subr.bf16.mxu0 0
      %351 = vmatpush1.bf16.xpose.msra.mxu0 0
      %352 = vmatprep.subr.bf16.mxu0 0
      %353 = vmatpush1.bf16.xpose.msra.mxu0 0
      %354 = vmatprep.subr.bf16.mxu0 0
      %355 = vmatpush1.bf16.xpose.msra.mxu0 0
      %356 = vmatprep.subr.bf16.mxu0 0
      %357 = vmatpush1.bf16.xpose.msra.mxu0 0
      %358 = vmatprep.subr.bf16.mxu0 0
      %359 = vmatpush1.bf16.xpose.msra.mxu0 %v342
      %360 = vmatprep.subr.bf16.mxu0 0
      %361 = vmatpush2.bf16.xpose.msra.mxu0 0
      %362 = vmatprep.subr.bf16.mxu0 0
      %363 = vmatpush2.bf16.xpose.msra.mxu0 0
      %364 = vmatprep.subr.bf16.mxu0 0
      %365 = vmatpush2.bf16.xpose.msra.mxu0 0
      %366 = vmatprep.subr.bf16.mxu0 0
      %367 = vmatpush2.bf16.xpose.msra.mxu0 0
      %368 = vmatprep.subr.bf16.mxu0 0
      %369 = vmatpush2.bf16.xpose.msra.mxu0 0
      %370 = vmatprep.subr.bf16.mxu0 0
      %371 = vmatpush2.bf16.xpose.msra.mxu0 0
      %372 = vmatprep.subr.bf16.mxu0 0
      %373 = vmatpush2.bf16.xpose.msra.mxu0 0
      %374 = vmatprep.subr.bf16.mxu0 0
      %375 = vmatpush2.bf16.xpose.msra.mxu0 0
      %376 = vmatprep.mubr.bf16.mxu0 0
      %377 = vmatmul.mubr.bf16.gmra.mxu0 %v339
      %v378 = vpop.f32.mrf.mxu0
      %v379 = vadd.f32 %v335, %v378
      %v380 = vpop.f32.mrf.mxu0
      %v381 = vpop.f32.mrf.mxu0
      %v382 = vpop.f32.mrf.mxu0
      %383 = vdwg.mxu0
      %v385 = vsel %vm337, %v325, 0
      %v388 = vsel %vm337, %v327, 0
      %390 = vmatprep.subr.bf16.mxu0 0
      %391 = vmatpush1.bf16.xpose.msra.mxu0 0
      %392 = vmatprep.subr.bf16.mxu0 0
      %393 = vmatpush1.bf16.xpose.msra.mxu0 0
      %394 = vmatprep.subr.bf16.mxu0 0
      %395 = vmatpush1.bf16.xpose.msra.mxu0 0
      %396 = vmatprep.subr.bf16.mxu0 0
      %397 = vmatpush1.bf16.xpose.msra.mxu0 0
      %398 = vmatprep.subr.bf16.mxu0 0
      %399 = vmatpush1.bf16.xpose.msra.mxu0 0
      %400 = vmatprep.subr.bf16.mxu0 0
      %401 = vmatpush1.bf16.xpose.msra.mxu0 0
      %402 = vmatprep.subr.bf16.mxu0 0
      %403 = vmatpush1.bf16.xpose.msra.mxu0 0
      %404 = vmatprep.subr.bf16.mxu0 0
      %405 = vmatpush1.bf16.xpose.msra.mxu0 %v388
      %406 = vmatprep.subr.bf16.mxu0 0
      %407 = vmatpush2.bf16.xpose.msra.mxu0 0
      %408 = vmatprep.subr.bf16.mxu0 0
      %409 = vmatpush2.bf16.xpose.msra.mxu0 0
      %410 = vmatprep.subr.bf16.mxu0 0
      %411 = vmatpush2.bf16.xpose.msra.mxu0 0
      %412 = vmatprep.subr.bf16.mxu0 0
      %413 = vmatpush2.bf16.xpose.msra.mxu0 0
      %414 = vmatprep.subr.bf16.mxu0 0
      %415 = vmatpush2.bf16.xpose.msra.mxu0 0
      %416 = vmatprep.subr.bf16.mxu0 0
      %417 = vmatpush2.bf16.xpose.msra.mxu0 0
      %418 = vmatprep.subr.bf16.mxu0 0
      %419 = vmatpush2.bf16.xpose.msra.mxu0 0
      %420 = vmatprep.subr.bf16.mxu0 0
      %421 = vmatpush2.bf16.xpose.msra.mxu0 0
      %422 = vmatprep.mubr.bf16.mxu0 0
      %423 = vmatmul.mubr.bf16.gmra.mxu0 %v385
      %v424 = vpop.f32.mrf.mxu0
      %v425 = vadd.f32 %v335, %v424
      %v426 = vpop.f32.mrf.mxu0
      %v427 = vpop.f32.mrf.mxu0
      %v428 = vpop.f32.mrf.mxu0
      %429 = vdwg.mxu0
      %v430 = vsel %vm337, %v379, -inf
      %431 = vmax.xlane.f32.xlu0 %v430
      %v432 = vpop.xlane.xlu0 %431
      %v433 = vsel %vm337, %v425, -inf
      %434 = vmax.xlane.f32.xlu0 %v433
      %v435 = vpop.xlane.xlu0 %434
      %v436 = vsub.f32 %v379, %v432
      %v437 = vsub.f32 %v425, %v435
      %v438 = vmul.f32 %v436, 1.442695
      %v439 = vpow.pop %v438
      %v440 = vmul.f32 %v437, 1.442695
      %v441 = vpow.pop %v440
      %v442 = vsel %vm337, %v439, 0.0
      %443 = vadd.xlane.f32.xlu0 %v442
      %v444 = vpop.xlane.xlu0 %443
      %v445 = vsel %vm337, %v441, 0.0
      %446 = vadd.xlane.f32.xlu0 %v445
      %v447 = vpop.xlane.xlu0 %446
      %v448 = vrcp.pop %v444
      %v449 = vrcp.pop %v447
      %v450 = vmul.f32 %v439, %v448
      %v451 = vmul.f32 %v441, %v449
      %v452 = vpack.c.bf16 %v450, %v450
      %v453 = vpack.c.bf16 %v451, %v451
      %v455 = vsel %vm337, %v452, 0
      %vm457 = vcmask 1043456
      %v459 = vsel %vm457, %v328, 0
      %461 = vmatprep.subr.bf16.mxu0 0
      %462 = vmatpush1.bf16.msra.mxu0 0
      %463 = vmatprep.subr.bf16.mxu0 0
      %464 = vmatpush1.bf16.msra.mxu0 0
      %465 = vmatprep.subr.bf16.mxu0 0
      %466 = vmatpush1.bf16.msra.mxu0 0
      %467 = vmatprep.subr.bf16.mxu0 0
      %468 = vmatpush1.bf16.msra.mxu0 0
      %469 = vmatprep.subr.bf16.mxu0 0
      %470 = vmatpush1.bf16.msra.mxu0 0
      %471 = vmatprep.subr.bf16.mxu0 0
      %472 = vmatpush1.bf16.msra.mxu0 0
      %473 = vmatprep.subr.bf16.mxu0 0
      %474 = vmatpush1.bf16.msra.mxu0 0
      %475 = vmatprep.subr.bf16.mxu0 0
      %476 = vmatpush1.bf16.msra.mxu0 %v459
      %477 = vmatprep.subr.bf16.mxu0 0
      %478 = vmatpush2.bf16.msra.mxu0 0
      %479 = vmatprep.subr.bf16.mxu0 0
      %480 = vmatpush2.bf16.msra.mxu0 0
      %481 = vmatprep.subr.bf16.mxu0 0
      %482 = vmatpush2.bf16.msra.mxu0 0
      %483 = vmatprep.subr.bf16.mxu0 0
      %484 = vmatpush2.bf16.msra.mxu0 0
      %485 = vmatprep.subr.bf16.mxu0 0
      %486 = vmatpush2.bf16.msra.mxu0 0
      %487 = vmatprep.subr.bf16.mxu0 0
      %488 = vmatpush2.bf16.msra.mxu0 0
      %489 = vmatprep.subr.bf16.mxu0 0
      %490 = vmatpush2.bf16.msra.mxu0 0
      %491 = vmatprep.subr.bf16.mxu0 0
      %492 = vmatpush2.bf16.msra.mxu0 0
      %493 = vmatprep.mubr.bf16.mxu0 0
      %494 = vmatmul.mubr.bf16.gmra.mxu0 %v455
      %v495 = vpop.f32.mrf.mxu0
      %v496 = vadd.f32 0.0, %v495
      %v497 = vpop.f32.mrf.mxu0
      %v498 = vpop.f32.mrf.mxu0
      %v499 = vpop.f32.mrf.mxu0
      %500 = vdwg.mxu0
      %v502 = vsel %vm337, %v453, 0
      %v505 = vsel %vm457, %v329, 0
      %507 = vmatprep.subr.bf16.mxu0 0
      %508 = vmatpush1.bf16.msra.mxu0 0
      %509 = vmatprep.subr.bf16.mxu0 0
      %510 = vmatpush1.bf16.msra.mxu0 0
      %511 = vmatprep.subr.bf16.mxu0 0
      %512 = vmatpush1.bf16.msra.mxu0 0
      %513 = vmatprep.subr.bf16.mxu0 0
      %514 = vmatpush1.bf16.msra.mxu0 0
      %515 = vmatprep.subr.bf16.mxu0 0
      %516 = vmatpush1.bf16.msra.mxu0 0
      %517 = vmatprep.subr.bf16.mxu0 0
      %518 = vmatpush1.bf16.msra.mxu0 0
      %519 = vmatprep.subr.bf16.mxu0 0
      %520 = vmatpush1.bf16.msra.mxu0 0
      %521 = vmatprep.subr.bf16.mxu0 0
      %522 = vmatpush1.bf16.msra.mxu0 %v505
      %523 = vmatprep.subr.bf16.mxu0 0
      %524 = vmatpush2.bf16.msra.mxu0 0
      %525 = vmatprep.subr.bf16.mxu0 0
      %526 = vmatpush2.bf16.msra.mxu0 0
      %527 = vmatprep.subr.bf16.mxu0 0
      %528 = vmatpush2.bf16.msra.mxu0 0
      %529 = vmatprep.subr.bf16.mxu0 0
      %530 = vmatpush2.bf16.msra.mxu0 0
      %531 = vmatprep.subr.bf16.mxu0 0
      %532 = vmatpush2.bf16.msra.mxu0 0
      %533 = vmatprep.subr.bf16.mxu0 0
      %534 = vmatpush2.bf16.msra.mxu0 0
      %535 = vmatprep.subr.bf16.mxu0 0
      %536 = vmatpush2.bf16.msra.mxu0 0
      %537 = vmatprep.subr.bf16.mxu0 0
      %538 = vmatpush2.bf16.msra.mxu0 0
      %539 = vmatprep.mubr.bf16.mxu0 0
      %540 = vmatmul.mubr.bf16.gmra.mxu0 %v502
      %v541 = vpop.f32.mrf.mxu0
      %v542 = vadd.f32 0.0, %v541
      %v543 = vpop.f32.mrf.mxu0
      %v544 = vpop.f32.mrf.mxu0
      %v545 = vpop.f32.mrf.mxu0
      %546 = vdwg.mxu0
      %v547 = vpack.c.bf16 %v496, %v496
      %v548 = vpack.c.bf16 %v542, %v542
      %vm549 = vcmask 60416
      %550 = vst.msk [vmem:[%s321] sm:$0xf] %vm549, %v547
      %551 = vst.msk [vmem:[%s321 + $0x4] sm:$0xf] %vm549, %v548
      %s552 = smul.u32 2, %s20
      %p553 = scmp.lt.s32.totalorder %s19, 1
      %s554 = scalar_select %p553, %s19, 1
      %p555 = scmp.lt.s32.totalorder %s552, 3
      %s556 = scalar_select %p555, %s552, 3
      %s557 = smul.addr %s554, 4
      %s558 = sadd.s32 %s556, %s557
      %s559 = smul.addr %s558, 4
      %s560 = scalar_lea.vmem %s4, %s559
      // Predicated region
      $region37: #{bert_relation_forward.14} parent=35 // pred_check
        %p561 = pneg %p157
      $region38: #{bert_relation_forward.14} parent=35 // pred_check_branch
        %563 = sbr.rel (%p561) target = $region40
      $region39: #{bert_relation_forward.14} parent=35 // pred_region
        %s564 = smul.u32 2, %s20
      $region40: #{bert_relation_forward.14} parent=35 // pred_fallthru
        _
    $region36: #{bert_relation_forward.14} parent=5 // pred_fallthru
      _
    %p565 = scmp.le.s32.totalorder 2, %s10
    // Predicated region
    $region41: #{bert_relation_forward.14} parent=5 // pred_check
      %p566 = pneg %p565
    $region42: #{bert_relation_forward.14} parent=5 // pred_check_branch
      %568 = sbr.rel (%p566) target = $region44
    $region43: #{bert_relation_forward.14} parent=5 // pred_region
      %s569 = ssub.s32 %s10, 2
      // Predicated region
      $region45: #{bert_relation_forward.14} parent=43 // pred_check
        %p570 = pneg %p163
      $region46: #{bert_relation_forward.14} parent=43 // pred_check_branch
        %572 = sbr.rel (%p570) target = $region48
      $region47: #{bert_relation_forward.14} parent=43 // pred_region
        %s573 = smul.u32 2, %s22
        %p574 = scmp.lt.s32.totalorder %s21, 1
        %s575 = scalar_select %p574, %s21, 1
        %p576 = scmp.lt.s32.totalorder %s573, 3
        %s577 = scalar_select %p576, %s573, 3
        %s578 = smul.addr %s575, 4
        %s579 = sadd.s32 %s577, %s578
        %s580 = smul.addr %s579, 4
        %s581 = scalar_lea.vmem %s4, %s580
      $region48: #{bert_relation_forward.14} parent=43 // pred_fallthru
        _
    $region44: #{bert_relation_forward.14} parent=5 // pred_fallthru
      _
  $region6: #{bert_relation_forward.14} parent=0 // loop_footer
    %s14 = sadd.s32 1, %s10
  $region7: #{bert_relation_forward.14} parent=0 // loop_footer_branch
    %9 = sbr.rel target = $region3
  $region8: #{bert_relation_forward.14} parent=0 // loop_exit
    _

// kernel: bert_relation_forward.15
$region0: #{bert_relation_forward.15}
  #allocation0 [shape = 'u32[]', space=smem, size = 0x4, offset = 0x4, fixed_abs, tag = 'smem constant byte address 0x4 - core index']
  #allocation1 [shape = 'u32[144,128]{1,0:T(1,128)}', space=vmem, size = 0x12000, scoped, tag = 'internal scratch']
  %s0 = inlined_call_operand.vmem [shape: bf16[16,32], index: 0, kind: input, shape index: {}]
  %s1 = inlined_call_operand.vmem [shape: bf16[32,32], index: 1, kind: input, shape index: {}]
  %s2 = inlined_call_operand.vmem [shape: f32[1,32], index: 2, kind: input, shape index: {}]
  %s3 = inlined_call_operand.vmem [shape: bf16[16,32], index: 3, kind: input, shape index: {}]
  %s4 = inlined_call_operand.vmem [shape: f32[1,32], index: 4, kind: input, shape index: {}]
  %s5 = inlined_call_operand.vmem [shape: f32[1,32], index: 5, kind: input, shape index: {}]
  %s6 = inlined_call_operand.vmem [shape: bf16[16,32], index: 6, kind: output, shape index: {}]
  %s7 = sld [smem:[#allocation0]]
  $region34: #{bert_relation_forward.15} parent=0
    _
  %s9 = ssub.s32 1, %s7
  %s10 = scalar_select 0, %s9, %s7
  // Predicated region
  $region2: #{bert_relation_forward.15} parent=0 // pred_check
    _
  $region3: #{bert_relation_forward.15} parent=0 // pred_check_branch
    %12 = sbr.rel (0) target = $region5
  $region4: #{bert_relation_forward.15} parent=0 // pred_region
    _
  $region5: #{bert_relation_forward.15} parent=0 // pred_fallthru
    _
  // Predicated region
  $region6: #{bert_relation_forward.15} parent=0 // pred_check
    _
  $region7: #{bert_relation_forward.15} parent=0 // pred_check_branch
    %14 = sbr.rel (0) target = $region9
  $region8: #{bert_relation_forward.15} parent=0 // pred_region
    _
  $region9: #{bert_relation_forward.15} parent=0 // pred_fallthru
    _
  // Predicated region
  $region10: #{bert_relation_forward.15} parent=0 // pred_check
    _
  $region11: #{bert_relation_forward.15} parent=0 // pred_check_branch
    %16 = sbr.rel (0) target = $region13
  $region12: #{bert_relation_forward.15} parent=0 // pred_region
    _
  $region13: #{bert_relation_forward.15} parent=0 // pred_fallthru
    _
  // Predicated region
  $region14: #{bert_relation_forward.15} parent=0 // pred_check
    _
  $region15: #{bert_relation_forward.15} parent=0 // pred_check_branch
    %18 = sbr.rel (0) target = $region17
  $region16: #{bert_relation_forward.15} parent=0 // pred_region
    _
  $region17: #{bert_relation_forward.15} parent=0 // pred_fallthru
    _
  // Predicated region
  $region18: #{bert_relation_forward.15} parent=0 // pred_check
    _
  $region19: #{bert_relation_forward.15} parent=0 // pred_check_branch
    %20 = sbr.rel (0) target = $region21
  $region20: #{bert_relation_forward.15} parent=0 // pred_region
    _
  $region21: #{bert_relation_forward.15} parent=0 // pred_fallthru
    _
  // Predicated region
  $region22: #{bert_relation_forward.15} parent=0 // pred_check
    _
  $region23: #{bert_relation_forward.15} parent=0 // pred_check_branch
    %22 = sbr.rel (0) target = $region25
  $region24: #{bert_relation_forward.15} parent=0 // pred_region
    _
  $region25: #{bert_relation_forward.15} parent=0 // pred_fallthru
    _
  %v24 = vld [vmem:[%s0] sm:$0xf]
  %v25 = vld [vmem:[%s0 + $0x4] sm:$0xf]
  %v26 = vld [vmem:[%s1] sm:$0xf]
  %v27 = vld [vmem:[%s1 + $0x4] sm:$0xf]
  %v28 = vld [vmem:[%s1 + $0x8] sm:$0xf]
  %v29 = vld [vmem:[%s1 + $0xc] sm:$0xf]
  %v30 = vld [vmem:[%s2] sm:$0x1]
  %v32 = vlaneseq
  %v33 = vshrl.u32 %v32, 7
  %v34 = vsub.s32 0, %v33
  %v35 = vrot.slane %v30, %v34
  %v39 = vunpack.c.l.b16 %v24
  %v40 = vunpack.c.l.b16 %v25
  %v41 = vpack.c.b16 %v40, %v39
  %v46 = vunpack.c.l.b16 %v26
  %v47 = vunpack.c.l.b16 %v27
  %v48 = vunpack.c.l.b16 %v28
  %v49 = vunpack.c.l.b16 %v29
  %v50 = vpack.c.b16 %v47, %v46
  %v51 = vpack.c.b16 %v49, %v48
  %vm54 = vcmask 261120
  %v56 = vsel %vm54, %v41, 0
  %58 = vmatprep.subr.bf16.mxu0 0
  %59 = vmatpush1.bf16.msra.mxu0 0
  %60 = vmatprep.subr.bf16.mxu0 0
  %61 = vmatpush1.bf16.msra.mxu0 0
  %62 = vmatprep.subr.bf16.mxu0 0
  %63 = vmatpush1.bf16.msra.mxu0 0
  %64 = vmatprep.subr.bf16.mxu0 0
  %65 = vmatpush1.bf16.msra.mxu0 0
  %66 = vmatprep.subr.bf16.mxu0 0
  %67 = vmatpush1.bf16.msra.mxu0 0
  %68 = vmatprep.subr.bf16.mxu0 0
  %69 = vmatpush1.bf16.msra.mxu0 0
  %70 = vmatprep.subr.bf16.mxu0 0
  %71 = vmatpush1.bf16.msra.mxu0 %v51
  %72 = vmatprep.subr.bf16.mxu0 0
  %73 = vmatpush1.bf16.msra.mxu0 %v50
  %74 = vmatprep.subr.bf16.mxu0 0
  %75 = vmatpush2.bf16.msra.mxu0 0
  %76 = vmatprep.subr.bf16.mxu0 0
  %77 = vmatpush2.bf16.msra.mxu0 0
  %78 = vmatprep.subr.bf16.mxu0 0
  %79 = vmatpush2.bf16.msra.mxu0 0
  %80 = vmatprep.subr.bf16.mxu0 0
  %81 = vmatpush2.bf16.msra.mxu0 0
  %82 = vmatprep.subr.bf16.mxu0 0
  %83 = vmatpush2.bf16.msra.mxu0 0
  %84 = vmatprep.subr.bf16.mxu0 0
  %85 = vmatpush2.bf16.msra.mxu0 0
  %86 = vmatprep.subr.bf16.mxu0 0
  %87 = vmatpush2.bf16.msra.mxu0 0
  %88 = vmatprep.subr.bf16.mxu0 0
  %89 = vmatpush2.bf16.msra.mxu0 0
  %90 = vmatprep.mubr.bf16.mxu0 0
  %91 = vmatmul.mubr.bf16.gmra.mxu0 %v56
  %v92 = vpop.f32.mrf.mxu0
  %v93 = vadd.f32 %v35, %v92
  %v94 = vpop.f32.mrf.mxu0
  %v95 = vpop.f32.mrf.mxu0
  %v96 = vadd.f32 %v35, %v95
  %v97 = vpop.f32.mrf.mxu0
  %98 = vdwg.mxu0
  %v99 = vld [vmem:[%s3] sm:$0xf]
  %v100 = vld [vmem:[%s3 + $0x4] sm:$0xf]
  %v101 = vunpack.c.l.bf16 %v99
  %v102 = vunpack.c.l.bf16 %v100
  %v103 = vadd.f32 %v93, %v101
  %v104 = vadd.f32 %v96, %v102
  %v105 = vsel %vm54, %v103, 0.0
  %106 = vadd.xlane.f32.xlu0 %v105
  %v107 = vpop.xlane.xlu0 %106
  %v108 = vsel %vm54, %v104, 0.0
  %109 = vadd.xlane.f32.xlu0 %v108
  %v110 = vpop.xlane.xlu0 %109
  %v111 = vrcp.pop 32.0
  %v112 = vmul.f32 %v107, %v111
  %v113 = vmul.f32 %v110, %v111
  %v114 = vsub.f32 %v103, %v112
  %v115 = vsub.f32 %v104, %v113
  %v116 = vmul.f32 %v114, %v114
  %v117 = vmul.f32 %v115, %v115
  %v118 = vsel %vm54, %v116, 0.0
  %119 = vadd.xlane.f32.xlu0 %v118
  %v120 = vpop.xlane.xlu0 %119
  %v121 = vsel %vm54, %v117, 0.0
  %122 = vadd.xlane.f32.xlu0 %v121
  %v123 = vpop.xlane.xlu0 %122
  %v124 = vmul.f32 %v120, %v111
  %v125 = vmul.f32 %v123, %v111
  %v126 = vadd.f32 %v124, 1e-12
  %v127 = vadd.f32 %v125, 1e-12
  %v128 = vrsqrt.pop %v126
  %v129 = vrsqrt.pop %v127
  %v130 = vmul.f32 %v114, %v128
  %v131 = vmul.f32 %v115, %v129
  %v132 = vld [vmem:[%s4] sm:$0x1]
  %v134 = vlaneseq
  %v135 = vshrl.u32 %v134, 7
  %v136 = vsub.s32 0, %v135
  %v137 = vrot.slane %v132, %v136
  %v139 = vmul.f32 %v130, %v137
  %v140 = vmul.f32 %v131, %v137
  %v141 = vld [vmem:[%s5] sm:$0x1]
  %v143 = vlaneseq
  %v144 = vshrl.u32 %v143, 7
  %v145 = vsub.s32 0, %v144
  %v146 = vrot.slane %v141, %v145
  %v148 = vadd.f32 %v139, %v146
  %v149 = vadd.f32 %v140, %v146
  %v150 = vpack.c.bf16 %v149, %v148
  %v152 = vunpack.c.l.b16 %v150
  %v153 = vunpack.c.h.b16 %v150
  %v154 = vpack.c.b16 %v152, %v152
  %v155 = vpack.c.b16 %v153, %v153
  %vm158 = vcmask 257024
  %159 = vst.msk [vmem:[%s6] sm:$0xf] %vm158, %v154
  %160 = vst.msk [vmem:[%s6 + $0x4] sm:$0xf] %vm158, %v155
  // Predicated region
  $region26: #{bert_relation_forward.15} parent=0 // pred_check
    _
  $region27: #{bert_relation_forward.15} parent=0 // pred_check_branch
    %162 = sbr.rel (0) target = $region29
  $region28: #{bert_relation_forward.15} parent=0 // pred_region
    _
  $region29: #{bert_relation_forward.15} parent=0 // pred_fallthru
    _
  // Predicated region
  $region30: #{bert_relation_forward.15} parent=0 // pred_check
    _
  $region31: #{bert_relation_forward.15} parent=0 // pred_check_branch
    %164 = sbr.rel (0) target = $region33
  $region32: #{bert_relation_forward.15} parent=0 // pred_region
    _
  $region33: #{bert_relation_forward.15} parent=0 // pred_fallthru
    _

// kernel: bert_relation_forward.16
$region0: #{bert_relation_forward.16}
  #allocation0 [shape = 'u32[]', space=smem, size = 0x4, offset = 0x4, fixed_abs, tag = 'smem constant byte address 0x4 - core index']
  #allocation1 [shape = 'u32[144,128]{1,0:T(1,128)}', space=vmem, size = 0x12000, scoped, tag = 'internal scratch']
  %s0 = inlined_call_operand.vmem [shape: bf16[16,32], index: 0, kind: input, shape index: {}]
  %s1 = inlined_call_operand.vmem [shape: bf16[32,64], index: 1, kind: input, shape index: {}]
  %s2 = inlined_call_operand.vmem [shape: f32[1,64], index: 2, kind: input, shape index: {}]
  %s3 = inlined_call_operand.vmem [shape: bf16[16,64], index: 3, kind: output, shape index: {}]
  %s4 = sld [smem:[#allocation0]]
  $region22: #{bert_relation_forward.16} parent=0
    _
  %s6 = ssub.s32 1, %s4
  %s7 = scalar_select 0, %s6, %s4
  // Predicated region
  $region2: #{bert_relation_forward.16} parent=0 // pred_check
    _
  $region3: #{bert_relation_forward.16} parent=0 // pred_check_branch
    %9 = sbr.rel (0) target = $region5
  $region4: #{bert_relation_forward.16} parent=0 // pred_region
    _
  $region5: #{bert_relation_forward.16} parent=0 // pred_fallthru
    _
  // Predicated region
  $region6: #{bert_relation_forward.16} parent=0 // pred_check
    _
  $region7: #{bert_relation_forward.16} parent=0 // pred_check_branch
    %11 = sbr.rel (0) target = $region9
  $region8: #{bert_relation_forward.16} parent=0 // pred_region
    _
  $region9: #{bert_relation_forward.16} parent=0 // pred_fallthru
    _
  // Predicated region
  $region10: #{bert_relation_forward.16} parent=0 // pred_check
    _
  $region11: #{bert_relation_forward.16} parent=0 // pred_check_branch
    %13 = sbr.rel (0) target = $region13
  $region12: #{bert_relation_forward.16} parent=0 // pred_region
    _
  $region13: #{bert_relation_forward.16} parent=0 // pred_fallthru
    _
  %v15 = vld [vmem:[%s0] sm:$0xf]
  %v16 = vld [vmem:[%s0 + $0x4] sm:$0xf]
  %v17 = vld [vmem:[%s1] sm:$0xf]
  %v18 = vld [vmem:[%s1 + $0x4] sm:$0xf]
  %v19 = vld [vmem:[%s1 + $0x8] sm:$0xf]
  %v20 = vld [vmem:[%s1 + $0xc] sm:$0xf]
  %v21 = vld [vmem:[%s2] sm:$0x1]
  %v23 = vlaneseq
  %v24 = vshrl.u32 %v23, 7
  %v25 = vsub.s32 0, %v24
  %v26 = vrot.slane %v21, %v25
  %v30 = vunpack.c.l.b16 %v15
  %v31 = vunpack.c.l.b16 %v16
  %v32 = vpack.c.b16 %v31, %v30
  %v37 = vunpack.c.l.b16 %v17
  %v38 = vunpack.c.l.b16 %v18
  %v39 = vunpack.c.l.b16 %v19
  %v40 = vunpack.c.l.b16 %v20
  %v41 = vpack.c.b16 %v38, %v37
  %v42 = vpack.c.b16 %v40, %v39
  %vm45 = vcmask 261120
  %v47 = vsel %vm45, %v32, 0
  %49 = vmatprep.subr.bf16.mxu0 0
  %50 = vmatpush1.bf16.msra.mxu0 0
  %51 = vmatprep.subr.bf16.mxu0 0
  %52 = vmatpush1.bf16.msra.mxu0 0
  %53 = vmatprep.subr.bf16.mxu0 0
  %54 = vmatpush1.bf16.msra.mxu0 0
  %55 = vmatprep.subr.bf16.mxu0 0
  %56 = vmatpush1.bf16.msra.mxu0 0
  %57 = vmatprep.subr.bf16.mxu0 0
  %58 = vmatpush1.bf16.msra.mxu0 0
  %59 = vmatprep.subr.bf16.mxu0 0
  %60 = vmatpush1.bf16.msra.mxu0 0
  %61 = vmatprep.subr.bf16.mxu0 0
  %62 = vmatpush1.bf16.msra.mxu0 %v42
  %63 = vmatprep.subr.bf16.mxu0 0
  %64 = vmatpush1.bf16.msra.mxu0 %v41
  %65 = vmatprep.subr.bf16.mxu0 0
  %66 = vmatpush2.bf16.msra.mxu0 0
  %67 = vmatprep.subr.bf16.mxu0 0
  %68 = vmatpush2.bf16.msra.mxu0 0
  %69 = vmatprep.subr.bf16.mxu0 0
  %70 = vmatpush2.bf16.msra.mxu0 0
  %71 = vmatprep.subr.bf16.mxu0 0
  %72 = vmatpush2.bf16.msra.mxu0 0
  %73 = vmatprep.subr.bf16.mxu0 0
  %74 = vmatpush2.bf16.msra.mxu0 0
  %75 = vmatprep.subr.bf16.mxu0 0
  %76 = vmatpush2.bf16.msra.mxu0 0
  %77 = vmatprep.subr.bf16.mxu0 0
  %78 = vmatpush2.bf16.msra.mxu0 0
  %79 = vmatprep.subr.bf16.mxu0 0
  %80 = vmatpush2.bf16.msra.mxu0 0
  %81 = vmatprep.mubr.bf16.mxu0 0
  %82 = vmatmul.mubr.bf16.gmra.mxu0 %v47
  %v83 = vpop.f32.mrf.mxu0
  %v84 = vadd.f32 %v26, %v83
  %v85 = vpop.f32.mrf.mxu0
  %v86 = vpop.f32.mrf.mxu0
  %v87 = vadd.f32 %v26, %v86
  %v88 = vpop.f32.mrf.mxu0
  %89 = vdwg.mxu0
  %v90 = vmul.f32 %v84, 0.5
  %v91 = vmul.f32 %v87, 0.5
  %v92 = vmul.f32 %v84, 0.044715
  %v93 = vmul.f32 %v87, 0.044715
  %v94 = vmul.f32 %v92, %v84
  %v95 = vmul.f32 %v93, %v87
  %v96 = vmul.f32 %v94, %v84
  %v97 = vmul.f32 %v95, %v87
  %v98 = vadd.f32 %v84, %v96
  %v99 = vadd.f32 %v87, %v97
  %v100 = vmul.f32 %v98, 0.7978846
  %v101 = vmul.f32 %v99, 0.7978846
  %v102 = vtanh.pop %v100
  %v103 = vtanh.pop %v101
  %v104 = vadd.f32 %v102, 1.0
  %v105 = vadd.f32 %v103, 1.0
  %v106 = vmul.f32 %v90, %v104
  %v107 = vmul.f32 %v91, %v105
  %v108 = vpack.c.bf16 %v107, %v106
  %v110 = vunpack.c.l.b16 %v108
  %v111 = vunpack.c.h.b16 %v108
  %v112 = vpack.c.b16 %v110, %v110
  %v113 = vpack.c.b16 %v111, %v111
  %vm116 = vcmask 519168
  %117 = vst.msk [vmem:[%s3] sm:$0xf] %vm116, %v112
  %118 = vst.msk [vmem:[%s3 + $0x4] sm:$0xf] %vm116, %v113
  // Predicated region
  $region14: #{bert_relation_forward.16} parent=0 // pred_check
    _
  $region15: #{bert_relation_forward.16} parent=0 // pred_check_branch
    %120 = sbr.rel (0) target = $region17
  $region16: #{bert_relation_forward.16} parent=0 // pred_region
    _
  $region17: #{bert_relation_forward.16} parent=0 // pred_fallthru
    _
  // Predicated region
  $region18: #{bert_relation_forward.16} parent=0 // pred_check
    _
  $region19: #{bert_relation_forward.16} parent=0 // pred_check_branch
    %122 = sbr.rel (0) target = $region21
  $region20: #{bert_relation_forward.16} parent=0 // pred_region
    _
  $region21: #{bert_relation_forward.16} parent=0 // pred_fallthru
    _

// kernel: bert_relation_forward.17
$region0: #{bert_relation_forward.17}
  #allocation0 [shape = 'u32[]', space=smem, size = 0x4, offset = 0x4, fixed_abs, tag = 'smem constant byte address 0x4 - core index']
  #allocation1 [shape = 'u32[144,128]{1,0:T(1,128)}', space=vmem, size = 0x12000, scoped, tag = 'internal scratch']
  %s0 = inlined_call_operand.vmem [shape: bf16[16,64], index: 0, kind: input, shape index: {}]
  %s1 = inlined_call_operand.vmem [shape: bf16[64,32], index: 1, kind: input, shape index: {}]
  %s2 = inlined_call_operand.vmem [shape: f32[1,32], index: 2, kind: input, shape index: {}]
  %s3 = inlined_call_operand.vmem [shape: bf16[16,32], index: 3, kind: input, shape index: {}]
  %s4 = inlined_call_operand.vmem [shape: f32[1,32], index: 4, kind: input, shape index: {}]
  %s5 = inlined_call_operand.vmem [shape: f32[1,32], index: 5, kind: input, shape index: {}]
  %s6 = inlined_call_operand.vmem [shape: bf16[16,32], index: 6, kind: output, shape index: {}]
  %s7 = sld [smem:[#allocation0]]
  $region34: #{bert_relation_forward.17} parent=0
    _
  %s9 = ssub.s32 1, %s7
  %s10 = scalar_select 0, %s9, %s7
  // Predicated region
  $region2: #{bert_relation_forward.17} parent=0 // pred_check
    _
  $region3: #{bert_relation_forward.17} parent=0 // pred_check_branch
    %12 = sbr.rel (0) target = $region5
  $region4: #{bert_relation_forward.17} parent=0 // pred_region
    _
  $region5: #{bert_relation_forward.17} parent=0 // pred_fallthru
    _
  // Predicated region
  $region6: #{bert_relation_forward.17} parent=0 // pred_check
    _
  $region7: #{bert_relation_forward.17} parent=0 // pred_check_branch
    %14 = sbr.rel (0) target = $region9
  $region8: #{bert_relation_forward.17} parent=0 // pred_region
    _
  $region9: #{bert_relation_forward.17} parent=0 // pred_fallthru
    _
  // Predicated region
  $region10: #{bert_relation_forward.17} parent=0 // pred_check
    _
  $region11: #{bert_relation_forward.17} parent=0 // pred_check_branch
    %16 = sbr.rel (0) target = $region13
  $region12: #{bert_relation_forward.17} parent=0 // pred_region
    _
  $region13: #{bert_relation_forward.17} parent=0 // pred_fallthru
    _
  // Predicated region
  $region14: #{bert_relation_forward.17} parent=0 // pred_check
    _
  $region15: #{bert_relation_forward.17} parent=0 // pred_check_branch
    %18 = sbr.rel (0) target = $region17
  $region16: #{bert_relation_forward.17} parent=0 // pred_region
    _
  $region17: #{bert_relation_forward.17} parent=0 // pred_fallthru
    _
  // Predicated region
  $region18: #{bert_relation_forward.17} parent=0 // pred_check
    _
  $region19: #{bert_relation_forward.17} parent=0 // pred_check_branch
    %20 = sbr.rel (0) target = $region21
  $region20: #{bert_relation_forward.17} parent=0 // pred_region
    _
  $region21: #{bert_relation_forward.17} parent=0 // pred_fallthru
    _
  // Predicated region
  $region22: #{bert_relation_forward.17} parent=0 // pred_check
    _
  $region23: #{bert_relation_forward.17} parent=0 // pred_check_branch
    %22 = sbr.rel (0) target = $region25
  $region24: #{bert_relation_forward.17} parent=0 // pred_region
    _
  $region25: #{bert_relation_forward.17} parent=0 // pred_fallthru
    _
  %v24 = vld [vmem:[%s0] sm:$0xf]
  %v25 = vld [vmem:[%s0 + $0x4] sm:$0xf]
  %v26 = vld [vmem:[%s1] sm:$0xf]
  %v27 = vld [vmem:[%s1 + $0x4] sm:$0xf]
  %v28 = vld [vmem:[%s1 + $0x8] sm:$0xf]
  %v29 = vld [vmem:[%s1 + $0xc] sm:$0xf]
  %v30 = vld [vmem:[%s1 + $0x10] sm:$0xf]
  %v31 = vld [vmem:[%s1 + $0x14] sm:$0xf]
  %v32 = vld [vmem:[%s1 + $0x18] sm:$0xf]
  %v33 = vld [vmem:[%s1 + $0x1c] sm:$0xf]
  %v34 = vld [vmem:[%s2] sm:$0x1]
  %v36 = vlaneseq
  %v37 = vshrl.u32 %v36, 7
  %v38 = vsub.s32 0, %v37
  %v39 = vrot.slane %v34, %v38
  %v43 = vunpack.c.l.b16 %v24
  %v44 = vunpack.c.l.b16 %v25
  %v45 = vpack.c.b16 %v44, %v43
  %v54 = vunpack.c.l.b16 %v26
  %v55 = vunpack.c.l.b16 %v27
  %v56 = vunpack.c.l.b16 %v28
  %v57 = vunpack.c.l.b16 %v29
  %v58 = vunpack.c.l.b16 %v30
  %v59 = vunpack.c.l.b16 %v31
  %v60 = vunpack.c.l.b16 %v32
  %v61 = vunpack.c.l.b16 %v33
  %v62 = vpack.c.b16 %v55, %v54
  %v63 = vpack.c.b16 %v57, %v56
  %v64 = vpack.c.b16 %v59, %v58
  %v65 = vpack.c.b16 %v61, %v60
  %vm70 = vcmask 523264
  %v72 = vsel %vm70, %v45, 0
  %74 = vmatprep.subr.bf16.mxu0 0
  %75 = vmatpush1.bf16.msra.mxu0 0
  %76 = vmatprep.subr.bf16.mxu0 0
  %77 = vmatpush1.bf16.msra.mxu0 0
  %78 = vmatprep.subr.bf16.mxu0 0
  %79 = vmatpush1.bf16.msra.mxu0 0
  %80 = vmatprep.subr.bf16.mxu0 0
  %81 = vmatpush1.bf16.msra.mxu0 0
  %82 = vmatprep.subr.bf16.mxu0 0
  %83 = vmatpush1.bf16.msra.mxu0 %v65
  %84 = vmatprep.subr.bf16.mxu0 0
  %85 = vmatpush1.bf16.msra.mxu0 %v64
  %86 = vmatprep.subr.bf16.mxu0 0
  %87 = vmatpush1.bf16.msra.mxu0 %v63
  %88 = vmatprep.subr.bf16.mxu0 0
  %89 = vmatpush1.bf16.msra.mxu0 %v62
  %90 = vmatprep.subr.bf16.mxu0 0
  %91 = vmatpush2.bf16.msra.mxu0 0
  %92 = vmatprep.subr.bf16.mxu0 0
  %93 = vmatpush2.bf16.msra.mxu0 0
  %94 = vmatprep.subr.bf16.mxu0 0
  %95 = vmatpush2.bf16.msra.mxu0 0
  %96 = vmatprep.subr.bf16.mxu0 0
  %97 = vmatpush2.bf16.msra.mxu0 0
  %98 = vmatprep.subr.bf16.mxu0 0
  %99 = vmatpush2.bf16.msra.mxu0 0
  %100 = vmatprep.subr.bf16.mxu0 0
  %101 = vmatpush2.bf16.msra.mxu0 0
  %102 = vmatprep.subr.bf16.mxu0 0
  %103 = vmatpush2.bf16.msra.mxu0 0
  %104 = vmatprep.subr.bf16.mxu0 0
  %105 = vmatpush2.bf16.msra.mxu0 0
  %106 = vmatprep.mubr.bf16.mxu0 0
  %107 = vmatmul.mubr.bf16.gmra.mxu0 %v72
  %v108 = vpop.f32.mrf.mxu0
  %v109 = vadd.f32 %v39, %v108
  %v110 = vpop.f32.mrf.mxu0
  %v111 = vpop.f32.mrf.mxu0
  %v112 = vadd.f32 %v39, %v111
  %v113 = vpop.f32.mrf.mxu0
  %114 = vdwg.mxu0
  %v115 = vld [vmem:[%s3] sm:$0xf]
  %v116 = vld [vmem:[%s3 + $0x4] sm:$0xf]
  %v117 = vunpack.c.l.bf16 %v115
  %v118 = vunpack.c.l.bf16 %v116
  %v119 = vadd.f32 %v109, %v117
  %v120 = vadd.f32 %v112, %v118
  %vm121 = vcmask 261120
  %v122 = vsel %vm121, %v119, 0.0
  %123 = vadd.xlane.f32.xlu0 %v122
  %v124 = vpop.xlane.xlu0 %123
  %v125 = vsel %vm121, %v120, 0.0
  %126 = vadd.xlane.f32.xlu0 %v125
  %v127 = vpop.xlane.xlu0 %126
  %v128 = vrcp.pop 32.0
  %v129 = vmul.f32 %v124, %v128
  %v130 = vmul.f32 %v127, %v128
  %v131 = vsub.f32 %v119, %v129
  %v132 = vsub.f32 %v120, %v130
  %v133 = vmul.f32 %v131, %v131
  %v134 = vmul.f32 %v132, %v132
  %v135 = vsel %vm121, %v133, 0.0
  %136 = vadd.xlane.f32.xlu0 %v135
  %v137 = vpop.xlane.xlu0 %136
  %v138 = vsel %vm121, %v134, 0.0
  %139 = vadd.xlane.f32.xlu0 %v138
  %v140 = vpop.xlane.xlu0 %139
  %v141 = vmul.f32 %v137, %v128
  %v142 = vmul.f32 %v140, %v128
  %v143 = vadd.f32 %v141, 1e-12
  %v144 = vadd.f32 %v142, 1e-12
  %v145 = vrsqrt.pop %v143
  %v146 = vrsqrt.pop %v144
  %v147 = vmul.f32 %v131, %v145
  %v148 = vmul.f32 %v132, %v146
  %v149 = vld [vmem:[%s4] sm:$0x1]
  %v151 = vlaneseq
  %v152 = vshrl.u32 %v151, 7
  %v153 = vsub.s32 0, %v152
  %v154 = vrot.slane %v149, %v153
  %v156 = vmul.f32 %v147, %v154
  %v157 = vmul.f32 %v148, %v154
  %v158 = vld [vmem:[%s5] sm:$0x1]
  %v160 = vlaneseq
  %v161 = vshrl.u32 %v160, 7
  %v162 = vsub.s32 0, %v161
  %v163 = vrot.slane %v158, %v162
  %v165 = vadd.f32 %v156, %v163
  %v166 = vadd.f32 %v157, %v163
  %v167 = vpack.c.bf16 %v166, %v165
  %v169 = vunpack.c.l.b16 %v167
  %v170 = vunpack.c.h.b16 %v167
  %v171 = vpack.c.b16 %v169, %v169
  %v172 = vpack.c.b16 %v170, %v170
  %vm175 = vcmask 257024
  %176 = vst.msk [vmem:[%s6] sm:$0xf] %vm175, %v171
  %177 = vst.msk [vmem:[%s6 + $0x4] sm:$0xf] %vm175, %v172
  // Predicated region
  $region26: #{bert_relation_forward.17} parent=0 // pred_check
    _
  $region27: #{bert_relation_forward.17} parent=0 // pred_check_branch
    %179 = sbr.rel (0) target = $region29
  $region28: #{bert_relation_forward.17} parent=0 // pred_region
    _
  $region29: #{bert_relation_forward.17} parent=0 // pred_fallthru
    _
  // Predicated region
  $region30: #{bert_relation_forward.17} parent=0 // pred_check
    _
  $region31: #{bert_relation_forward.17} parent=0 // pred_check_branch
    %181 = sbr.rel (0) target = $region33
  $region32: #{bert_relation_forward.17} parent=0 // pred_region
    _
  $region33: #{bert_relation_forward.17} parent=0 // pred_fallthru
    _

// kernel: bert_relation_forward.23
$region0: #{bert_relation_forward.23}
  #allocation0 [shape = 'u32[]', space=smem, size = 0x4, offset = 0x4, fixed_abs, tag = 'smem constant byte address 0x4 - core index']
  #allocation1 [shape = 'u32[144,128]{1,0:T(1,128)}', space=vmem, size = 0x12000, scoped, tag = 'internal scratch']
  %s0 = inlined_call_operand.vmem [shape: bf16[2,8,32], index: 0, kind: input, shape index: {}]
  %s1 = inlined_call_operand.vmem [shape: bf16[2,4,8], index: 1, kind: input, shape index: {}]
  %s2 = inlined_call_operand.vmem [shape: bf16[32,128], index: 2, kind: input, shape index: {}]
  %s3 = inlined_call_operand.vmem [shape: bf16[32,128], index: 3, kind: input, shape index: {}]
  %s4 = inlined_call_operand.vmem [shape: f32[1,128], index: 4, kind: input, shape index: {}]
  %s5 = inlined_call_operand.vmem [shape: f32[2,2,128], index: 5, kind: input, shape index: {}]
  %s6 = inlined_call_operand.hbm [shape: f32[2,2,128], index: 6, kind: output, shape index: {0}]
  %s7 = inlined_call_operand.vmem [shape: f32[2,2,128], index: 7, kind: output, shape index: {1}]
  %s8 = inlined_call_operand.vmem [shape: f32[2,1,128], index: 8, kind: output, shape index: {2}]
  %9 = xla_tuple %s6, %s7, %s8
  %s10 = sld [smem:[#allocation0]]
  $region73: #{bert_relation_forward.23} parent=0
    _
  %s12 = ssub.s32 1, %s10
  %s13 = scalar_select 0, %s12, %s10
  $region1: #{bert_relation_forward.23} parent=0
    #allocation2 [shape = 'u8[2048]{0}', space=vmem, size = 0x800, scoped, tag = 'output window, operand 0']
    #allocation3 [shape = 's32[2]{0}', space=sflag, size = 0x8, scoped, tag = 'scoped memory for bert_relation_forward.23']
    %14 = vsyncpa [#allocation3], 0
    %s15 = scalar_lea.sflag [#allocation3], 1
    %16 = vsyncpa %s15, 0
    loop: start=0, step=1, limit=4
    $region2: #{bert_relation_forward.23} parent=1 // loop_pre_header
      _
    $region3: #{bert_relation_forward.23} parent=1 // loop_header
      %s18 = sphi 0, %s22
      %p19 = scmp.ge.s32.totalorder %s18, 4
      %s28 = sphi 0, %s30
      %s31 = sphi 0, %s28
      %s32 = sphi 0, %s31
      %s48 = sphi 0, %s32
      %s54 = sphi 0, %s56
      %s57 = sphi 0, %s54
      %s58 = sphi 0, %s57
      %s74 = sphi 0, %s58
      %s78 = sphi 0, %s78
      %s80 = sphi 0, %s78
      %s81 = sphi 0, %s80
      %s95 = sphi 0, %s81
      %s99 = sphi 0, %s99
      %s101 = sphi 0, %s99
      %s102 = sphi 0, %s101
      %s116 = sphi 0, %s102
      %s120 = sphi 0, %s120
      %s122 = sphi 0, %s120
      %s123 = sphi 0, %s122
      %s137 = sphi 0, %s123
      %s143 = sphi 0, %s145
      %s146 = sphi 0, %s143
      %s147 = sphi 0, %s146
      %s163 = sphi 0, %s147
      %s169 = sphi 0, %s171
      %s172 = sphi 0, %s169
      %s173 = sphi 0, %s172
      %s189 = sphi 0, %s173
      %s195 = sphi 0, %s197
      %s198 = sphi 0, %s195
      %s199 = sphi 0, %s198
      %s215 = sphi 0, %s199
      %s221 = sphi 0, %s223
      %s224 = sphi 0, %s221
      %s225 = sphi 0, %s224
      %s241 = sphi 0, %s225
    $region4: #{bert_relation_forward.23} parent=1 // loop_header_branch
      %21 = sbr.rel (%p19) target = $region8
    $region5: #{bert_relation_forward.23} parent=1 // loop_body
      %s23 = ssub.s32 %s18, 1
      %s24 = ssub.s32 %s18, 2
      %s25 = sadd.s32 %s18, 1
      %s26 = ssub.s32 %s18, %s25
      %p27 = scmp.eq.s32.totalorder %s26, 0
      %s29 = sadd.s32 %s28, 1
      %s30 = scalar_select %p27, %s28, %s29
      %p33 = pneg %p27
      %p34 = scmp.eq.s32.totalorder %s18, 1
      %p35 = por %p33, %p34
      %p36 = scmp.ne.s32.totalorder %s28, %s31
      %p37 = scmp.eq.s32.totalorder %s18, 0
      %p38 = por %p36, %p37
      %p39 = scmp.ne.s32.totalorder %s28, %s31
      %p40 = scmp.eq.s32.totalorder %s23, 1
      %p41 = por %p39, %p40
      %p42 = scmp.ne.s32.totalorder %s31, %s32
      %p43 = scmp.eq.s32.totalorder %s23, 0
      %p44 = por %p42, %p43
      %p45 = scmp.ne.s32.totalorder %s31, %s32
      %p46 = scmp.eq.s32.totalorder %s24, 1
      %p47 = por %p45, %p46
      %p49 = scmp.ne.s32.totalorder %s32, %s48
      %p50 = scmp.eq.s32.totalorder %s24, 0
      %p51 = por %p49, %p50
      %s52 = ssub.s32 %s18, %s25
      %p53 = scmp.eq.s32.totalorder %s52, 0
      %s55 = sadd.s32 %s54, 1
      %s56 = scalar_select %p53, %s54, %s55
      %p59 = pneg %p53
      %p60 = scmp.eq.s32.totalorder %s18, 1
      %p61 = por %p59, %p60
      %p62 = scmp.ne.s32.totalorder %s54, %s57
      %p63 = scmp.eq.s32.totalorder %s18, 0
      %p64 = por %p62, %p63
      %p65 = scmp.ne.s32.totalorder %s54, %s57
      %p66 = scmp.eq.s32.totalorder %s23, 1
      %p67 = por %p65, %p66
      %p68 = scmp.ne.s32.totalorder %s57, %s58
      %p69 = scmp.eq.s32.totalorder %s23, 0
      %p70 = por %p68, %p69
      %p71 = scmp.ne.s32.totalorder %s57, %s58
      %p72 = scmp.eq.s32.totalorder %s24, 1
      %p73 = por %p71, %p72
      %p75 = scmp.ne.s32.totalorder %s58, %s74
      %p76 = scmp.eq.s32.totalorder %s24, 0
      %p77 = por %p75, %p76
      %s79 = sadd.s32 %s78, 1
      %p82 = scmp.eq.s32.totalorder %s18, 1
      %p83 = scmp.ne.s32.totalorder %s78, %s80
      %p84 = scmp.eq.s32.totalorder %s18, 0
      %p85 = por %p83, %p84
      %p86 = scmp.ne.s32.totalorder %s78, %s80
      %p87 = scmp.eq.s32.totalorder %s23, 1
      %p88 = por %p86, %p87
      %p89 = scmp.ne.s32.totalorder %s80, %s81
      %p90 = scmp.eq.s32.totalorder %s23, 0
      %p91 = por %p89, %p90
      %p92 = scmp.ne.s32.totalorder %s80, %s81
      %p93 = scmp.eq.s32.totalorder %s24, 1
      %p94 = por %p92, %p93
      %p96 = scmp.ne.s32.totalorder %s81, %s95
      %p97 = scmp.eq.s32.totalorder %s24, 0
      %p98 = por %p96, %p97
      %s100 = sadd.s32 %s99, 1
      %p103 = scmp.eq.s32.totalorder %s18, 1
      %p104 = scmp.ne.s32.totalorder %s99, %s101
      %p105 = scmp.eq.s32.totalorder %s18, 0
      %p106 = por %p104, %p105
      %p107 = scmp.ne.s32.totalorder %s99, %s101
      %p108 = scmp.eq.s32.totalorder %s23, 1
      %p109 = por %p107, %p108
      %p110 = scmp.ne.s32.totalorder %s101, %s102
      %p111 = scmp.eq.s32.totalorder %s23, 0
      %p112 = por %p110, %p111
      %p113 = scmp.ne.s32.totalorder %s101, %s102
      %p114 = scmp.eq.s32.totalorder %s24, 1
      %p115 = por %p113, %p114
      %p117 = scmp.ne.s32.totalorder %s102, %s116
      %p118 = scmp.eq.s32.totalorder %s24, 0
      %p119 = por %p117, %p118
      %s121 = sadd.s32 %s120, 1
      %p124 = scmp.eq.s32.totalorder %s18, 1
      %p125 = scmp.ne.s32.totalorder %s120, %s122
      %p126 = scmp.eq.s32.totalorder %s18, 0
      %p127 = por %p125, %p126
      %p128 = scmp.ne.s32.totalorder %s120, %s122
      %p129 = scmp.eq.s32.totalorder %s23, 1
      %p130 = por %p128, %p129
      %p131 = scmp.ne.s32.totalorder %s122, %s123
      %p132 = scmp.eq.s32.totalorder %s23, 0
      %p133 = por %p131, %p132
      %p134 = scmp.ne.s32.totalorder %s122, %s123
      %p135 = scmp.eq.s32.totalorder %s24, 1
      %p136 = por %p134, %p135
      %p138 = scmp.ne.s32.totalorder %s123, %s137
      %p139 = scmp.eq.s32.totalorder %s24, 0
      %p140 = por %p138, %p139
      %s141 = ssub.s32 %s18, %s25
      %p142 = scmp.eq.s32.totalorder %s141, 0
      %s144 = sadd.s32 %s143, 1
      %s145 = scalar_select %p142, %s143, %s144
      %p148 = pneg %p142
      %p149 = scmp.eq.s32.totalorder %s18, 1
      %p150 = por %p148, %p149
      %p151 = scmp.ne.s32.totalorder %s143, %s146
      %p152 = scmp.eq.s32.totalorder %s18, 0
      %p153 = por %p151, %p152
      %p154 = scmp.ne.s32.totalorder %s143, %s146
      %p155 = scmp.eq.s32.totalorder %s23, 1
      %p156 = por %p154, %p155
      %p157 = scmp.ne.s32.totalorder %s146, %s147
      %p158 = scmp.eq.s32.totalorder %s23, 0
      %p159 = por %p157, %p158
      %p160 = scmp.ne.s32.totalorder %s146, %s147
      %p161 = scmp.eq.s32.totalorder %s24, 1
      %p162 = por %p160, %p161
      %p164 = scmp.ne.s32.totalorder %s147, %s163
      %p165 = scmp.eq.s32.totalorder %s24, 0
      %p166 = por %p164, %p165
      %s167 = ssub.s32 %s18, %s25
      %p168 = scmp.eq.s32.totalorder %s167, 0
      %s170 = sadd.s32 %s169, 1
      %s171 = scalar_select %p168, %s169, %s170
      %p174 = pneg %p168
      %p175 = scmp.eq.s32.totalorder %s18, 1
      %p176 = por %p174, %p175
      %p177 = scmp.ne.s32.totalorder %s169, %s172
      %p178 = scmp.eq.s32.totalorder %s18, 0
      %p179 = por %p177, %p178
      %p180 = scmp.ne.s32.totalorder %s169, %s172
      %p181 = scmp.eq.s32.totalorder %s23, 1
      %p182 = por %p180, %p181
      %p183 = scmp.ne.s32.totalorder %s172, %s173
      %p184 = scmp.eq.s32.totalorder %s23, 0
      %p185 = por %p183, %p184
      %p186 = scmp.ne.s32.totalorder %s172, %s173
      %p187 = scmp.eq.s32.totalorder %s24, 1
      %p188 = por %p186, %p187
      %p190 = scmp.ne.s32.totalorder %s173, %s189
      %p191 = scmp.eq.s32.totalorder %s24, 0
      %p192 = por %p190, %p191
      %s193 = ssub.s32 %s18, %s25
      %p194 = scmp.eq.s32.totalorder %s193, 0
      %s196 = sadd.s32 %s195, 1
      %s197 = scalar_select %p194, %s195, %s196
      %p200 = pneg %p194
      %p201 = scmp.eq.s32.totalorder %s18, 1
      %p202 = por %p200, %p201
      %p203 = scmp.ne.s32.totalorder %s195, %s198
      %p204 = scmp.eq.s32.totalorder %s18, 0
      %p205 = por %p203, %p204
      %p206 = scmp.ne.s32.totalorder %s195, %s198
      %p207 = scmp.eq.s32.totalorder %s23, 1
      %p208 = por %p206, %p207
      %p209 = scmp.ne.s32.totalorder %s198, %s199
      %p210 = scmp.eq.s32.totalorder %s23, 0
      %p211 = por %p209, %p210
      %p212 = scmp.ne.s32.totalorder %s198, %s199
      %p213 = scmp.eq.s32.totalorder %s24, 1
      %p214 = por %p212, %p213
      %p216 = scmp.ne.s32.totalorder %s199, %s215
      %p217 = scmp.eq.s32.totalorder %s24, 0
      %p218 = por %p216, %p217
      %s219 = ssub.s32 %s18, %s25
      %p220 = scmp.eq.s32.totalorder %s219, 0
      %s222 = sadd.s32 %s221, 1
      %s223 = scalar_select %p220, %s221, %s222
      %p226 = pneg %p220
      %p227 = scmp.eq.s32.totalorder %s18, 1
      %p228 = por %p226, %p227
      %p229 = scmp.ne.s32.totalorder %s221, %s224
      %p230 = scmp.eq.s32.totalorder %s18, 0
      %p231 = por %p229, %p230
      %p232 = scmp.ne.s32.totalorder %s221, %s224
      %p233 = scmp.eq.s32.totalorder %s23, 1
      %p234 = por %p232, %p233
      %p235 = scmp.ne.s32.totalorder %s224, %s225
      %p236 = scmp.eq.s32.totalorder %s23, 0
      %p237 = por %p235, %p236
      %p238 = scmp.ne.s32.totalorder %s224, %s225
      %p239 = scmp.eq.s32.totalorder %s24, 1
      %p240 = por %p238, %p239
      %p242 = scmp.ne.s32.totalorder %s225, %s241
      %p243 = scmp.eq.s32.totalorder %s24, 0
      %p244 = por %p242, %p243
      %p245 = scmp.le.s32.totalorder 1, %s18
      %p246 = scmp.lt.s32.totalorder %s18, 3
      %p247 = pnand %p245, %p246
      %p248 = pneg %p247
      // Predicated region
      $region9: #{bert_relation_forward.23} parent=5 // pred_check
        _
      $region10: #{bert_relation_forward.23} parent=5 // pred_check_branch
        %250 = sbr.rel (%p247) target = $region12
      $region11: #{bert_relation_forward.23} parent=5 // pred_region
        %s251 = ssub.s32 %s18, 1
        // Predicated region
        $region13: #{bert_relation_forward.23} parent=11 // pred_check
          %p252 = pneg %p91
        $region14: #{bert_relation_forward.23} parent=11 // pred_check_branch
          %254 = sbr.rel (%p252) target = $region16
        $region15: #{bert_relation_forward.23} parent=11 // pred_region
          _
        $region16: #{bert_relation_forward.23} parent=11 // pred_fallthru
          _
        // Predicated region
        $region17: #{bert_relation_forward.23} parent=11 // pred_check
          %p255 = pneg %p112
        $region18: #{bert_relation_forward.23} parent=11 // pred_check_branch
          %257 = sbr.rel (%p255) target = $region20
        $region19: #{bert_relation_forward.23} parent=11 // pred_region
          _
        $region20: #{bert_relation_forward.23} parent=11 // pred_fallthru
          _
        // Predicated region
        $region21: #{bert_relation_forward.23} parent=11 // pred_check
          %p258 = pneg %p133
        $region22: #{bert_relation_forward.23} parent=11 // pred_check_branch
          %260 = sbr.rel (%p258) target = $region24
        $region23: #{bert_relation_forward.23} parent=11 // pred_region
          _
        $region24: #{bert_relation_forward.23} parent=11 // pred_fallthru
          _
      $region12: #{bert_relation_forward.23} parent=5 // pred_fallthru
        _
      %p261 = scmp.lt.s32.totalorder %s18, 2
      // Predicated region
      $region25: #{bert_relation_forward.23} parent=5 // pred_check
        %p262 = pneg %p261
      $region26: #{bert_relation_forward.23} parent=5 // pred_check_branch
        %264 = sbr.rel (%p262) target = $region28
      $region27: #{bert_relation_forward.23} parent=5 // pred_region
        // Predicated region
        $region29: #{bert_relation_forward.23} parent=27 // pred_check
          %p265 = pneg %p38
        $region30: #{bert_relation_forward.23} parent=27 // pred_check_branch
          %267 = sbr.rel (%p265) target = $region32
        $region31: #{bert_relation_forward.23} parent=27 // pred_region
          %p268 = scmp.lt.s32.totalorder %s18, 1
          %s269 = scalar_select %p268, %s18, 1
          %s270 = smul.addr %s269, 4
          %s271 = scalar_lea.vmem %s0, %s270
        $region32: #{bert_relation_forward.23} parent=27 // pred_fallthru
          _
        // Predicated region
        $region33: #{bert_relation_forward.23} parent=27 // pred_check
          %p272 = pneg %p64
        $region34: #{bert_relation_forward.23} parent=27 // pred_check_branch
          %274 = sbr.rel (%p272) target = $region36
        $region35: #{bert_relation_forward.23} parent=27 // pred_region
          %p275 = scmp.lt.s32.totalorder %s18, 1
          %s276 = scalar_select %p275, %s18, 1
          %s277 = smul.addr %s276, 2
          %s278 = scalar_lea.vmem %s1, %s277
        $region36: #{bert_relation_forward.23} parent=27 // pred_fallthru
          _
        // Predicated region
        $region37: #{bert_relation_forward.23} parent=27 // pred_check
          %p279 = pneg %p153
        $region38: #{bert_relation_forward.23} parent=27 // pred_check_branch
          %281 = sbr.rel (%p279) target = $region40
        $region39: #{bert_relation_forward.23} parent=27 // pred_region
          %p282 = scmp.lt.s32.totalorder %s18, 1
          %s283 = scalar_select %p282, %s18, 1
          %s284 = smul.addr %s283, 2
          %s285 = scalar_lea.vmem %s5, %s284
        $region40: #{bert_relation_forward.23} parent=27 // pred_fallthru
          _
      $region28: #{bert_relation_forward.23} parent=5 // pred_fallthru
        _
      %p286 = scmp.le.s32.totalorder 1, %s18
      %p287 = scmp.lt.s32.totalorder %s18, 3
      %p288 = pnand %p286, %p287
      %p289 = pneg %p288
      // Predicated region
      $region41: #{bert_relation_forward.23} parent=5 // pred_check
        _
      $region42: #{bert_relation_forward.23} parent=5 // pred_check_branch
        %291 = sbr.rel (%p288) target = $region44
      $region43: #{bert_relation_forward.23} parent=5 // pred_region
        %s292 = ssub.s32 %s18, 1
        %p293 = scmp.lt.s32.totalorder %s23, 1
        %s294 = scalar_select %p293, %s23, 1
        %s295 = smul.addr %s294, 4
        %s296 = scalar_lea.vmem %s0, %s295
        %p297 = pneg %p44
        %p298 = pneg %p41
        %p299 = scmp.lt.s32.totalorder %s23, 1
        %s300 = scalar_select %p299, %s23, 1
        %s301 = smul.addr %s300, 2
        %s302 = scalar_lea.vmem %s1, %s301
        %p303 = pneg %p70
        %p304 = pneg %p67
        %p305 = pneg %p91
        %p306 = pneg %p88
        %p307 = pneg %p112
        %p308 = pneg %p109
        %p309 = pneg %p133
        %p310 = pneg %p130
        %p311 = scmp.lt.s32.totalorder %s23, 1
        %s312 = scalar_select %p311, %s23, 1
        %s313 = smul.addr %s312, 2
        %s314 = scalar_lea.vmem %s5, %s313
        %p315 = pneg %p159
        %p316 = pneg %p156
        %p317 = pneg %p185
        %p318 = pneg %p182
        %s319 = sand.u32 %s172, 1
        %s320 = scalar_lea.sflag [#allocation3], %s319
        %s321 = sand.u32 %s172, 1
        %s322 = smul.addr %s321, 2
        %s323 = scalar_lea.vmem [#allocation2], %s322
        %p324 = pneg %p211
        %p325 = pneg %p208
        %p326 = scmp.lt.s32.totalorder %s23, 1
        %s327 = scalar_select %p326, %s23, 1
        %s328 = smul.addr %s327, 2
        %s329 = scalar_lea.vmem %s7, %s328
        %p330 = pneg %p237
        %p331 = pneg %p234
        %p332 = scmp.lt.s32.totalorder %s23, 1
        %s333 = scalar_select %p332, %s23, 1
        %s334 = scalar_lea.vmem %s8, %s333
        %p335 = scmp.lt.s32.totalorder %s23, 1
        %s336 = scalar_select %p335, %s23, 1
        %s337 = smul.addr %s336, 4
        %s338 = scalar_lea.vmem %s0, %s337
        %p339 = scmp.lt.s32.totalorder %s23, 1
        %s340 = scalar_select %p339, %s23, 1
        %s341 = smul.addr %s340, 2
        %s342 = scalar_lea.vmem %s1, %s341
        %p343 = scmp.lt.s32.totalorder %s23, 1
        %s344 = scalar_select %p343, %s23, 1
        %s345 = smul.addr %s344, 2
        %s346 = scalar_lea.vmem %s5, %s345
        %p347 = scmp.lt.s32.totalorder %s23, 1
        %s348 = scalar_select %p347, %s23, 1
        %s349 = smul.addr %s348, 2
        %s350 = scalar_lea.vmem %s7, %s349
        %p351 = scmp.lt.s32.totalorder %s23, 1
        %s352 = scalar_select %p351, %s23, 1
        %s353 = scalar_lea.vmem %s8, %s352
        %v355 = vld [vmem:[%s338] sm:$0xf]
        %v356 = vld [vmem:[%s342] sm:$0x3]
        %vm357 = vcmask 64512
        %v359 = vsel %vm357, %v356, 0
        %vm361 = vcmask 1043456
        %v363 = vsel %vm361, %v355, 0
        %365 = vmatprep.subr.bf16.mxu0 0
        %366 = vmatpush1.bf16.msra.mxu0 0
        %367 = vmatprep.subr.bf16.mxu0 0
        %368 = vmatpush1.bf16.msra.mxu0 0
        %369 = vmatprep.subr.bf16.mxu0 0
        %370 = vmatpush1.bf16.msra.mxu0 0
        %371 = vmatprep.subr.bf16.mxu0 0
        %372 = vmatpush1.bf16.msra.mxu0 0
        %373 = vmatprep.subr.bf16.mxu0 0
        %374 = vmatpush1.bf16.msra.mxu0 0
        %375 = vmatprep.subr.bf16.mxu0 0
        %376 = vmatpush1.bf16.msra.mxu0 0
        %377 = vmatprep.subr.bf16.mxu0 0
        %378 = vmatpush1.bf16.msra.mxu0 0
        %379 = vmatprep.subr.bf16.mxu0 0
        %380 = vmatpush1.bf16.msra.mxu0 %v363
        %381 = vmatprep.subr.bf16.mxu0 0
        %382 = vmatpush2.bf16.msra.mxu0 0
        %383 = vmatprep.subr.bf16.mxu0 0
        %384 = vmatpush2.bf16.msra.mxu0 0
        %385 = vmatprep.subr.bf16.mxu0 0
        %386 = vmatpush2.bf16.msra.mxu0 0
        %387 = vmatprep.subr.bf16.mxu0 0
        %388 = vmatpush2.bf16.msra.mxu0 0
        %389 = vmatprep.subr.bf16.mxu0 0
        %390 = vmatpush2.bf16.msra.mxu0 0
        %391 = vmatprep.subr.bf16.mxu0 0
        %392 = vmatpush2.bf16.msra.mxu0 0
        %393 = vmatprep.subr.bf16.mxu0 0
        %394 = vmatpush2.bf16.msra.mxu0 0
        %395 = vmatprep.subr.bf16.mxu0 0
        %396 = vmatpush2.bf16.msra.mxu0 0
        %397 = vmatprep.mubr.bf16.mxu0 0
        %398 = vmatmul.mubr.bf16.gmra.mxu0 %v359
        %v399 = vpop.f32.mrf.mxu0
        %v400 = vadd.f32 0.0, %v399
        %v401 = vpop.f32.mrf.mxu0
        %v402 = vpop.f32.mrf.mxu0
        %v403 = vpop.f32.mrf.mxu0
        %404 = vdwg.mxu0
        %v405 = vpack.c.bf16 %v400, %v400
        %v406 = vld [vmem:[%s2] sm:$0xf]
        %v407 = vld [vmem:[%s2 + $0x4] sm:$0xf]
        %v408 = vld [vmem:[%s2 + $0x8] sm:$0xf]
        %v409 = vld [vmem:[%s2 + $0xc] sm:$0xf]
        %v410 = vld [vmem:[%s3] sm:$0xf]
        %v411 = vld [vmem:[%s3 + $0x4] sm:$0xf]
        %v412 = vld [vmem:[%s3 + $0x8] sm:$0xf]
        %v413 = vld [vmem:[%s3 + $0xc] sm:$0xf]
        %v415 = vrot.slane %v405, 1
        %v420 = vunpack.c.l.b16 %v410
        %v421 = vunpack.c.l.b16 %v411
        %v422 = vunpack.c.l.b16 %v412
        %v423 = vunpack.c.l.b16 %v413
        %v424 = vpack.c.b16 %v421, %v420
        %v425 = vpack.c.b16 %v423, %v422
        %vm428 = vcmask 261120
        %v430 = vsel %vm428, %v415, 0
        %432 = vmatprep.subr.bf16.mxu0 0
        %433 = vmatpush1.bf16.msra.mxu0 0
        %434 = vmatprep.subr.bf16.mxu0 0
        %435 = vmatpush1.bf16.msra.mxu0 0
        %436 = vmatprep.subr.bf16.mxu0 0
        %437 = vmatpush1.bf16.msra.mxu0 0
        %438 = vmatprep.subr.bf16.mxu0 0
        %439 = vmatpush1.bf16.msra.mxu0 0
        %440 = vmatprep.subr.bf16.mxu0 0
        %441 = vmatpush1.bf16.msra.mxu0 0
        %442 = vmatprep.subr.bf16.mxu0 0
        %443 = vmatpush1.bf16.msra.mxu0 0
        %444 = vmatprep.subr.bf16.mxu0 0
        %445 = vmatpush1.bf16.msra.mxu0 %v425
        %446 = vmatprep.subr.bf16.mxu0 0
        %447 = vmatpush1.bf16.msra.mxu0 %v424
        %448 = vmatprep.subr.bf16.mxu0 0
        %449 = vmatpush2.bf16.msra.mxu0 0
        %450 = vmatprep.subr.bf16.mxu0 0
        %451 = vmatpush2.bf16.msra.mxu0 0
        %452 = vmatprep.subr.bf16.mxu0 0
        %453 = vmatpush2.bf16.msra.mxu0 0
        %454 = vmatprep.subr.bf16.mxu0 0
        %455 = vmatpush2.bf16.msra.mxu0 0
        %456 = vmatprep.subr.bf16.mxu0 0
        %457 = vmatpush2.bf16.msra.mxu0 0
        %458 = vmatprep.subr.bf16.mxu0 0
        %459 = vmatpush2.bf16.msra.mxu0 0
        %460 = vmatprep.subr.bf16.mxu0 0
        %461 = vmatpush2.bf16.msra.mxu0 0
        %462 = vmatprep.subr.bf16.mxu0 0
        %463 = vmatpush2.bf16.msra.mxu0 0
        %464 = vmatprep.mubr.bf16.mxu0 0
        %465 = vmatmul.mubr.bf16.gmra.mxu0 %v430
        %v466 = vpop.f32.mrf.mxu0
        %v467 = vadd.f32 0.0, %v466
        %v468 = vpop.f32.mrf.mxu0
        %v469 = vpop.f32.mrf.mxu0
        %v470 = vpop.f32.mrf.mxu0
        %471 = vdwg.mxu0
        %v476 = vunpack.c.l.b16 %v406
        %v477 = vunpack.c.l.b16 %v407
        %v478 = vunpack.c.l.b16 %v408
        %v479 = vunpack.c.l.b16 %v409
        %v480 = vpack.c.b16 %v477, %v476
        %v481 = vpack.c.b16 %v479, %v478
        %v485 = vsel %vm428, %v405, 0
        %487 = vmatprep.subr.bf16.mxu0 0
        %488 = vmatpush1.bf16.msra.mxu0 0
        %489 = vmatprep.subr.bf16.mxu0 0
        %490 = vmatpush1.bf16.msra.mxu0 0
        %491 = vmatprep.subr.bf16.mxu0 0
        %492 = vmatpush1.bf16.msra.mxu0 0
        %493 = vmatprep.subr.bf16.mxu0 0
        %494 = vmatpush1.bf16.msra.mxu0 0
        %495 = vmatprep.subr.bf16.mxu0 0
        %496 = vmatpush1.bf16.msra.mxu0 0
        %497 = vmatprep.subr.bf16.mxu0 0
        %498 = vmatpush1.bf16.msra.mxu0 0
        %499 = vmatprep.subr.bf16.mxu0 0
        %500 = vmatpush1.bf16.msra.mxu0 %v481
        %501 = vmatprep.subr.bf16.mxu0 0
        %502 = vmatpush1.bf16.msra.mxu0 %v480
        %503 = vmatprep.subr.bf16.mxu0 0
        %504 = vmatpush2.bf16.msra.mxu0 0
        %505 = vmatprep.subr.bf16.mxu0 0
        %506 = vmatpush2.bf16.msra.mxu0 0
        %507 = vmatprep.subr.bf16.mxu0 0
        %508 = vmatpush2.bf16.msra.mxu0 0
        %509 = vmatprep.subr.bf16.mxu0 0
        %510 = vmatpush2.bf16.msra.mxu0 0
        %511 = vmatprep.subr.bf16.mxu0 0
        %512 = vmatpush2.bf16.msra.mxu0 0
        %513 = vmatprep.subr.bf16.mxu0 0
        %514 = vmatpush2.bf16.msra.mxu0 0
        %515 = vmatprep.subr.bf16.mxu0 0
        %516 = vmatpush2.bf16.msra.mxu0 0
        %517 = vmatprep.subr.bf16.mxu0 0
        %518 = vmatpush2.bf16.msra.mxu0 0
        %519 = vmatprep.mubr.bf16.mxu0 0
        %520 = vmatmul.mubr.bf16.gmra.mxu0 %v485
        %v521 = vpop.f32.mrf.mxu0
        %v522 = vadd.f32 %v467, %v521
        %v523 = vpop.f32.mrf.mxu0
        %v524 = vpop.f32.mrf.mxu0
        %v525 = vpop.f32.mrf.mxu0
        %526 = vdwg.mxu0
        %v527 = vld [vmem:[%s4] sm:$0x1]
        %v529 = vlaneseq
        %v530 = vshrl.u32 %v529, 7
        %v531 = vsub.s32 0, %v530
        %v532 = vrot.slane %v527, %v531
        %v534 = vadd.f32 %v522, %v532
        %535 = vst [vmem:[%s323] sm:$0x3] %v534
        %v536 = vmax.f32 %v534, -30.0
        %v537 = vmin.f32 %v536, 30.0
        %v538 = vsub.f32 0.0, %v537
        %v539 = vmul.f32 %v538, 1.442695
        %v540 = vpow.pop %v539
        %v541 = vadd.f32 %v540, 1.0
        %v542 = vrcp.pop %v541
        %v543 = vmul.f32 1.0, %v542
        %544 = vst [vmem:[%s350] sm:$0x3] %v543
        %vm545 = vcmask 1041408
        %v546 = vsel %vm545, %v534, -inf
        %547 = vmax.xlane.f32.xlu0 %v546
        %v548 = vpop.xlane.xlu0 %547
        %v549 = vsub.f32 %v534, %v548
        %v550 = vmul.f32 %v549, 1.442695
        %v551 = vpow.pop %v550
        %v552 = vsel %vm545, %v551, 0.0
        %553 = vadd.xlane.f32.xlu0 %v552
        %v554 = vpop.xlane.xlu0 %553
        %v555 = vlog2.pop %v554
        %v556 = vmul.f32 %v555, 0.6931472
        %v557 = vadd.f32 %v548, %v556
        %v558 = vld [vmem:[%s346] sm:$0x3]
        %v559 = vsub.f32 %v534, %v557
        %v560 = vmul.f32 %v558, %v559
        %v561 = vsel %vm545, %v560, 0.0
        %562 = vadd.xlane.f32.xlu0 %v561
        %v563 = vpop.xlane.xlu0 %562
        %v564 = vrot.slane %v563, 4
        %v565 = vadd.f32 %v563, %v564
        %v566 = vrot.slane %v565, 2
        %v567 = vadd.f32 %v565, %v566
        %v568 = vrot.slane %v567, 1
        %v569 = vadd.f32 %v567, %v568
        %s570 = vtos %v569
        %s571 = ssub.f32 0.0, %s570
        %v572 = vstv %s571
        %573 = vst [vmem:[%s353] sm:$0x1] %v572
        %s574 = sand.u32 %s172, 1
        %s575 = scalar_lea.sflag [#allocation3], %s574
        %s576 = sand.u32 %s172, 1
        %s577 = smul.addr %s576, 2
        %s578 = scalar_lea.vmem [#allocation2], %s577
        %p579 = scmp.lt.s32.totalorder %s23, 1
        %s580 = scalar_select %p579, %s23, 1
        %s581 = smul.addr %s580, 2
        %s582 = scalar_lea.vmem %s7, %s581
        %p583 = scmp.lt.s32.totalorder %s23, 1
        %s584 = scalar_select %p583, %s23, 1
        %s585 = scalar_lea.vmem %s8, %s584
        // Predicated region
        $region45: #{bert_relation_forward.23} parent=43 // pred_check
          %p586 = pneg %p182
        $region46: #{bert_relation_forward.23} parent=43 // pred_check_branch
          %588 = sbr.rel (%p586) target = $region48
        $region47: #{bert_relation_forward.23} parent=43 // pred_region
          %s590 = ssub.s32 32, 32
          %591 = vsyncadd %s575, %s590
          %s592 = smul.addr %s23, 32
          %s593 = scalar_lea.hbm %s6, %s592
          %s595 = sshll.u32 %s578, 4
          %s596 = int_to_ptr.vmem [resolvable:$true] %s595
          %598 = dma.vmem_to_hbm [thread:$0]  %s596, 32, %s593, %s575
        $region48: #{bert_relation_forward.23} parent=43 // pred_fallthru
          _
        // Predicated region
        $region49: #{bert_relation_forward.23} parent=43 // pred_check
          %p599 = pneg %p208
        $region50: #{bert_relation_forward.23} parent=43 // pred_check_branch
          %601 = sbr.rel (%p599) target = $region52
        $region51: #{bert_relation_forward.23} parent=43 // pred_region
          _
        $region52: #{bert_relation_forward.23} parent=43 // pred_fallthru
          _
        // Predicated region
        $region53: #{bert_relation_forward.23} parent=43 // pred_check
          %p602 = pneg %p234
        $region54: #{bert_relation_forward.23} parent=43 // pred_check_branch
          %604 = sbr.rel (%p602) target = $region56
        $region55: #{bert_relation_forward.23} parent=43 // pred_region
          _
        $region56: #{bert_relation_forward.23} parent=43 // pred_fallthru
          _
      $region44: #{bert_relation_forward.23} parent=5 // pred_fallthru
        _
      %p605 = scmp.le.s32.totalorder 2, %s18
      // Predicated region
      $region57: #{bert_relation_forward.23} parent=5 // pred_check
        %p606 = pneg %p605
      $region58: #{bert_relation_forward.23} parent=5 // pred_check_branch
        %608 = sbr.rel (%p606) target = $region60
      $region59: #{bert_relation_forward.23} parent=5 // pred_region
        %s609 = ssub.s32 %s18, 2
        // Predicated region
        $region61: #{bert_relation_forward.23} parent=59 // pred_check
          %p610 = pneg %p188
        $region62: #{bert_relation_forward.23} parent=59 // pred_check_branch
          %612 = sbr.rel (%p610) target = $region64
        $region63: #{bert_relation_forward.23} parent=59 // pred_region
          %s613 = sand.u32 %s173, 1
          %s614 = scalar_lea.sflag [#allocation3], %s613
          %s615 = sand.u32 %s173, 1
          %s616 = smul.addr %s615, 2
          %s617 = scalar_lea.vmem [#allocation2], %s616
          %618 = dma.done %s614, 32
        $region64: #{bert_relation_forward.23} parent=59 // pred_fallthru
          _
        // Predicated region
        $region65: #{bert_relation_forward.23} parent=59 // pred_check
          %p619 = pneg %p214
        $region66: #{bert_relation_forward.23} parent=59 // pred_check_branch
          %621 = sbr.rel (%p619) target = $region68
        $region67: #{bert_relation_forward.23} parent=59 // pred_region
          %p622 = scmp.lt.s32.totalorder %s24, 1
          %s623 = scalar_select %p622, %s24, 1
          %s624 = smul.addr %s623, 2
          %s625 = scalar_lea.vmem %s7, %s624
        $region68: #{bert_relation_forward.23} parent=59 // pred_fallthru
          _
        // Predicated region
        $region69: #{bert_relation_forward.23} parent=59 // pred_check
          %p626 = pneg %p240
        $region70: #{bert_relation_forward.23} parent=59 // pred_check_branch
          %628 = sbr.rel (%p626) target = $region72
        $region71: #{bert_relation_forward.23} parent=59 // pred_region
          %p629 = scmp.lt.s32.totalorder %s24, 1
          %s630 = scalar_select %p629, %s24, 1
          %s631 = scalar_lea.vmem %s8, %s630
        $region72: #{bert_relation_forward.23} parent=59 // pred_fallthru
          _
      $region60: #{bert_relation_forward.23} parent=5 // pred_fallthru
        _
    $region6: #{bert_relation_forward.23} parent=1 // loop_footer
      %s22 = sadd.s32 1, %s18
    $region7: #{bert_relation_forward.23} parent=1 // loop_footer_branch
      %17 = sbr.rel target = $region3
    $region8: #{bert_relation_forward.23} parent=1 // loop_exit
      _
    %632 = vsyncpa [#allocation3], 1
    %s633 = scalar_lea.sflag [#allocation3], 1
    %634 = vsyncpa %s633, 1

</llo_original>
